<compile_context>
chip_gen: v7x
topology: tpu7x:2x2x1
jax: 0.10.0
libtpu: 0.0.40
codegen_flags: <defaults>
</compile_context>

<pallas_src>
import functools

import jax
import jax.numpy as jnp
from jax.experimental import pallas as pl
from jax.experimental.pallas import tpu as pltpu


def _focal_loss_kernel(pred_ref, target_ref, weight_ref, out_ref,
                       acc_wbce_ref, acc_focal_ref,
                       *, n_valid, tile_n, tiles_per_core, gamma, alpha):
    ci = pl.program_id(0)                  # core-split axis
    ji = pl.program_id(1)                  # streaming reduction axis (arbitrary)
    n_j = pl.num_programs(1)

    @pl.when(ji == 0)
    def _init():
        acc_wbce_ref[...] = jnp.zeros_like(acc_wbce_ref)
        acc_focal_ref[...] = jnp.zeros_like(acc_focal_ref)

    row0 = (ci * tiles_per_core + ji) * tile_n

    x = pred_ref[...].astype(jnp.float32)      # (tile_n, C), only in-kernel cast
    t = target_ref[...].astype(jnp.float32)    # (tile_n, C)
    w = weight_ref[...].astype(jnp.float32)    # (1, tile_n), lane-dense

    # Validity masks for the ragged tail (boundary blocks hold undefined data).
    rows_sub = row0 + jax.lax.broadcasted_iota(jnp.int32, (tile_n, 1), 0)
    valid_sub = rows_sub < n_valid                                   # (tile_n, 1)
    rows_lane = row0 + jax.lax.broadcasted_iota(jnp.int32, (1, tile_n), 1)
    valid_lane = (rows_lane < n_valid).astype(jnp.float32)           # (1, tile_n)

    # Zero invalid rows BEFORE exp/log/max so garbage can never poison the sums.
    x = jnp.where(valid_sub, x, 0.0)
    t = jnp.where(valid_sub, t, 0.0)
    w = jnp.where(rows_lane < n_valid, w, 0.0)

    # Stable fused BCE-with-logits: max(x,0) - x*t + log(1 + exp(-|x|)).
    e = jnp.exp(-jnp.abs(x))                   # reused below for sigmoid
    bce = jnp.maximum(x, 0.0) - x * t + jnp.log(1.0 + e)

    # sigmoid(x) from the already-computed exp(-|x|); reciprocal goes to the EUP.
    inv = pl.reciprocal(1.0 + e, approx=True)
    p = jnp.where(x >= 0.0, inv, e * inv)

    # pt = (1-p)*t + p*(1-t) = p + t - 2*p*t ; alpha term simplified algebraically.
    pt = p + t - 2.0 * p * t
    alpha_w = (2.0 * alpha - 1.0) * t + (1.0 - alpha)
    if float(gamma) == 2.0:
        mod = pt * pt                          # common ReppointV1 config
    elif float(gamma) == 1.0:
        mod = pt
    else:
        mod = jnp.power(pt, jnp.float32(gamma))
    focal = alpha_w * mod

    # Per-tile reduction on the (otherwise idle) MXU: two (1,tile_n)·(tile_n,C)
    # matvecs accumulated into tiny (1,C) f32 scratch.  The masked/weighted LHS
    # vectors are exact zeros for invalid rows, so the boundary tile adds nothing.
    acc_wbce_ref[...] += jnp.dot(w, bce,
                                 preferred_element_type=jnp.float32,
                                 precision=jax.lax.Precision.HIGHEST)
    acc_focal_ref[...] += jnp.dot(valid_lane, focal,
                                  preferred_element_type=jnp.float32,
                                  precision=jax.lax.Precision.HIGHEST)

    @pl.when(ji == n_j - 1)
    def _finalize():
        s_wbce = jnp.sum(acc_wbce_ref[...])
        s_focal = jnp.sum(acc_focal_ref[...])
        lane = jax.lax.broadcasted_iota(jnp.int32, (8, 128), 1)
        out_ref[...] = jnp.where(lane == 0, s_wbce,
                                 jnp.where(lane == 1, s_focal, 0.0))


def _tensorcore_count():
    """Best-effort TensorCore-per-device count (v7x has 2; v5e/v6e have 1)."""
    try:
        kind = jax.devices()[0].device_kind.lower()
    except Exception:
        return 1
    if "v7" in kind or "7x" in kind:
        return 2
    return 1


def focal_loss_forward(pred, target, weight, *, gamma=2.0, alpha=0.25,
                       loss_weight=1.0, tile_n=None):
    """loss = loss_weight * mean(W * bce) * sum(focal_w)   (ReppointV1 semantics).

    pred/target: (N, C) in their native dtype (f32/bf16/...); weight: (N,).
    """
    n, c = pred.shape
    num_cores = _tensorcore_count()

    # Pick a tile: multiple of 128 (lane-dense weight blocks + (8,128) rule),
    # big enough to amortise the ~0.35us per-step overhead, small enough that
    # each core still gets >= ~4 tiles for pipelining when N allows.
    if tile_n is None:
        if n < 128:
            num_cores = 1
            tile_n = n                      # single full-extent block
        else:
            per_core = pl.cdiv(n, num_cores)
            tile_n = (per_core // 4) // 128 * 128
            tile_n = min(2048, max(128, tile_n))
    tiles_per_core = pl.cdiv(pl.cdiv(n, num_cores), tile_n)
    n_cover = num_cores * tiles_per_core * tile_n

    # Only the tiny weight vector is padded (zeros); pred/target stream unpadded
    # and the ragged tail is masked in-kernel.
    weight_row = weight.reshape(1, n)
    if n_cover != n:
        weight_row = jnp.pad(weight_row, ((0, 0), (0, n_cover - n)))

    kernel = functools.partial(
        _focal_loss_kernel,
        n_valid=n, tile_n=tile_n, tiles_per_core=tiles_per_core,
        gamma=float(gamma), alpha=float(alpha))

    row_map = lambda ci, ji: (ci * tiles_per_core + ji, 0)
    w_map = lambda ci, ji: (0, ci * tiles_per_core + ji)

    if num_cores > 1:
        # On v7x, only core_parallel-style semantics guarantee the 2-TC split.
        lead_sem = getattr(pltpu, "CORE_PARALLEL", "parallel")
    else:
        lead_sem = "parallel"

    partials = pl.pallas_call(
        kernel,
        out_shape=jax.ShapeDtypeStruct((num_cores * 8, 128), jnp.float32),
        grid_spec=pltpu.PrefetchScalarGridSpec(
            num_scalar_prefetch=0,
            grid=(num_cores, tiles_per_core),
            in_specs=[
                pl.BlockSpec((tile_n, c), row_map),
                pl.BlockSpec((tile_n, c), row_map),
                pl.BlockSpec((1, tile_n), w_map),
            ],
            out_specs=pl.BlockSpec((8, 128), lambda ci, ji: (ci, 0)),
            scratch_shapes=[
                pltpu.VMEM((1, c), jnp.float32),   # per-class sum(W * bce) partials
                pltpu.VMEM((1, c), jnp.float32),   # per-class sum(focal_w) partials
            ],
        ),
        compiler_params=pltpu.CompilerParams(
            dimension_semantics=(lead_sem, "arbitrary"),
            vmem_limit_bytes=32 * 1024 * 1024,
        ),
    )(pred, target, weight_row)

    # Combine the per-core partial slabs (row 0 of each (8,128) slab, lanes 0/1).
    sum_wbce = jnp.sum(partials[0::8, 0])
    sum_focal = jnp.sum(partials[0::8, 1])
    mean_wbce = sum_wbce / jnp.float32(n * c)
    return jnp.float32(loss_weight) * mean_wbce * sum_focal


def focal_loss_reference(pred, target, weight, *, gamma=2.0, alpha=0.25,
                         loss_weight=1.0):
    """Pure-JAX reference matching the PyTorch module's forward."""
    x = pred.astype(jnp.float32)
    t = target.astype(jnp.float32)
    w = weight.astype(jnp.float32)[:, None]
    p = jax.nn.sigmoid(x)
    pt = (1.0 - p) * t + p * (1.0 - t)
    focal_w = (alpha * t + (1.0 - alpha) * (1.0 - t)) * pt ** gamma
    bce = jnp.maximum(x, 0.0) - x * t + jnp.log(1.0 + jnp.exp(-jnp.abs(x)))
    criterion = jnp.mean(w * bce)
    return loss_weight * criterion * jnp.sum(focal_w)


if __name__ == "__main__":
    key = jax.random.PRNGKey(0)
    k1, k2, k3 = jax.random.split(key, 3)

    N, C = 256, 80   # C = 80 classes, as hard-coded by weight.repeat(80, 1) in the module
    pred = jax.random.normal(k1, (N, C), dtype=jnp.float32) * 2.0
    target = (jax.random.uniform(k2, (N, C)) < 0.1).astype(jnp.float32)
    weight = jax.random.uniform(k3, (N,), dtype=jnp.float32)

    loss = jax.block_until_ready(focal_loss_forward(pred, target, weight))
    ref = jax.block_until_ready(focal_loss_reference(pred, target, weight))

    if not bool(jnp.allclose(loss, ref, rtol=5e-3, atol=1e-3)):
        raise AssertionError(f"mismatch: pallas={float(loss)} ref={float(ref)}")
    print("KERNEL_OK")
</pallas_src>

<mosaic_0001>
module attributes {stable_mosaic.version = 11 : i64} {
  func.func @_focal_loss_kernel(%arg0: i32, %arg1: i32, %arg2: memref<128x80xf32, #tpu.memory_space<vmem>>, %arg3: memref<128x80xf32, #tpu.memory_space<vmem>>, %arg4: memref<1x128xf32, #tpu.memory_space<vmem>>, %arg5: memref<8x128xf32, #tpu.memory_space<vmem>>, %arg6: memref<1x80xf32, #tpu.memory_space<vmem>>, %arg7: memref<1x80xf32, #tpu.memory_space<vmem>>) attributes {dimension_semantics = [#tpu.dimension_semantics<parallel>, #tpu.dimension_semantics<arbitrary>], iteration_bounds = array<i64: 1, 2>, scalar_prefetch = 0 : i64, scratch_operands = 2 : i64, tpu.core_type = #tpu.core_type<tc>, window_params = [{transform_indices = @transform_0, window_bounds = array<i64: 128, 80>}, {transform_indices = @transform_1, window_bounds = array<i64: 128, 80>}, {transform_indices = @transform_2, window_bounds = array<i64: 1, 128>}, {transform_indices = @transform_3, window_bounds = array<i64: 8, 128>}]} {
    %c0_i32 = arith.constant 0 : i32
    %0 = arith.cmpi eq, %arg1, %c0_i32 : i32
    %1 = arith.extui %0 : i1 to i32
    %c0_i32_0 = arith.constant 0 : i32
    %2 = arith.cmpi ne, %1, %c0_i32_0 : i32
    scf.if %2 {
      %cst_29 = arith.constant 0.000000e+00 : f32
      %74 = vector.broadcast %cst_29 : f32 to vector<1x80xf32>
      %c0_30 = arith.constant 0 : index
      %c0_31 = arith.constant 0 : index
      %75 = vector.load %arg6[%c0_30, %c0_31] : memref<1x80xf32, #tpu.memory_space<vmem>>, vector<1x80xf32>
      tpu.vector_store %arg6[%c0_30, %c0_31], %74 {strides = array<i32>} : memref<1x80xf32, #tpu.memory_space<vmem>>, vector<1x80xf32>,
      %cst_32 = arith.constant 0.000000e+00 : f32
      %76 = vector.broadcast %cst_32 : f32 to vector<1x80xf32>
      %c0_33 = arith.constant 0 : index
      %c0_34 = arith.constant 0 : index
      %77 = vector.load %arg7[%c0_33, %c0_34] : memref<1x80xf32, #tpu.memory_space<vmem>>, vector<1x80xf32>
      tpu.vector_store %arg7[%c0_33, %c0_34], %76 {strides = array<i32>} : memref<1x80xf32, #tpu.memory_space<vmem>>, vector<1x80xf32>,
    } else {
    }
    %c2_i32 = arith.constant 2 : i32
    %3 = arith.muli %arg0, %c2_i32 : i32
    %4 = arith.addi %3, %arg1 : i32
    %c128_i32 = arith.constant 128 : i32
    %5 = arith.muli %4, %c128_i32 : i32
    %c0 = arith.constant 0 : index
    %c0_1 = arith.constant 0 : index
    %6 = vector.load %arg2[%c0, %c0_1] : memref<128x80xf32, #tpu.memory_space<vmem>>, vector<128x80xf32>
    %c0_2 = arith.constant 0 : index
    %c0_3 = arith.constant 0 : index
    %7 = vector.load %arg3[%c0_2, %c0_3] : memref<128x80xf32, #tpu.memory_space<vmem>>, vector<128x80xf32>
    %c0_4 = arith.constant 0 : index
    %c0_5 = arith.constant 0 : index
    %8 = vector.load %arg4[%c0_4, %c0_5] : memref<1x128xf32, #tpu.memory_space<vmem>>, vector<1x128xf32>
    %9 = tpu.iota {dimensions = array<i32: 0>} : vector<128x1xi32>
    %10 = vector.broadcast %5 : i32 to vector<128x1xi32>
    %11 = arith.addi %10, %9 : vector<128x1xi32>
    %c256_i32 = arith.constant 256 : i32
    %12 = vector.broadcast %c256_i32 : i32 to vector<128x1xi32>
    %13 = arith.cmpi slt, %11, %12 : vector<128x1xi32>
    %14 = tpu.iota {dimensions = array<i32: 1>} : vector<1x128xi32>
    %15 = vector.broadcast %5 : i32 to vector<1x128xi32>
    %16 = arith.addi %15, %14 : vector<1x128xi32>
    %c256_i32_6 = arith.constant 256 : i32
    %17 = vector.broadcast %c256_i32_6 : i32 to vector<1x128xi32>
    %18 = arith.cmpi slt, %16, %17 : vector<1x128xi32>
    %19 = arith.extui %18 : vector<1x128xi1> to vector<1x128xi32>
    %20 = arith.sitofp %19 : vector<1x128xi32> to vector<1x128xf32>
    %cst = arith.constant 0.000000e+00 : f32
    %21 = vector.shape_cast %13 : vector<128x1xi1> to vector<128x1xi1>
    %22 = vector.broadcast %21 : vector<128x1xi1> to vector<128x80xi1>
    %23 = vector.broadcast %cst : f32 to vector<128x80xf32>
    %24 = arith.select %22, %6, %23 : vector<128x80xi1>, vector<128x80xf32>
    %cst_7 = arith.constant 0.000000e+00 : f32
    %25 = vector.shape_cast %13 : vector<128x1xi1> to vector<128x1xi1>
    %26 = vector.broadcast %25 : vector<128x1xi1> to vector<128x80xi1>
    %27 = vector.broadcast %cst_7 : f32 to vector<128x80xf32>
    %28 = arith.select %26, %7, %27 : vector<128x80xi1>, vector<128x80xf32>
    %c256_i32_8 = arith.constant 256 : i32
    %29 = vector.broadcast %c256_i32_8 : i32 to vector<1x128xi32>
    %30 = arith.cmpi slt, %16, %29 : vector<1x128xi32>
    %cst_9 = arith.constant 0.000000e+00 : f32
    %31 = vector.broadcast %cst_9 : f32 to vector<1x128xf32>
    %32 = arith.select %30, %8, %31 : vector<1x128xi1>, vector<1x128xf32>
    %33 = math.absf %24 : vector<128x80xf32>
    %cst_10 = arith.constant 0.000000e+00 : f32
    %34 = vector.broadcast %cst_10 : f32 to vector<128x80xf32>
    %35 = arith.subf %34, %33 : vector<128x80xf32>
    %36 = math.exp %35 : vector<128x80xf32>
    %cst_11 = arith.constant 0.000000e+00 : f32
    %37 = vector.broadcast %cst_11 : f32 to vector<128x80xf32>
    %38 = arith.maximumf %24, %37 : vector<128x80xf32>
    %39 = arith.mulf %24, %28 : vector<128x80xf32>
    %40 = arith.subf %38, %39 : vector<128x80xf32>
    %cst_12 = arith.constant 1.000000e+00 : f32
    %41 = vector.broadcast %cst_12 : f32 to vector<128x80xf32>
    %42 = arith.addf %41, %36 : vector<128x80xf32>
    %43 = math.log %42 : vector<128x80xf32>
    %44 = arith.addf %40, %43 : vector<128x80xf32>
    %cst_13 = arith.constant 1.000000e+00 : f32
    %45 = vector.broadcast %cst_13 : f32 to vector<128x80xf32>
    %46 = arith.addf %45, %36 : vector<128x80xf32>
    %47 = tpu.reciprocal %46 {approx = true} : vector<128x80xf32> -> vector<128x80xf32>
    %cst_14 = arith.constant 0.000000e+00 : f32
    %48 = vector.broadcast %cst_14 : f32 to vector<128x80xf32>
    %49 = arith.cmpf oge, %24, %48 : vector<128x80xf32>
    %50 = arith.mulf %36, %47 : vector<128x80xf32>
    %51 = arith.select %49, %47, %50 : vector<128x80xi1>, vector<128x80xf32>
    %52 = arith.addf %51, %28 : vector<128x80xf32>
    %cst_15 = arith.constant 2.000000e+00 : f32
    %53 = vector.broadcast %cst_15 : f32 to vector<128x80xf32>
    %54 = arith.mulf %53, %51 : vector<128x80xf32>
    %55 = arith.mulf %54, %28 : vector<128x80xf32>
    %56 = arith.subf %52, %55 : vector<128x80xf32>
    %cst_16 = arith.constant -5.000000e-01 : f32
    %57 = vector.broadcast %cst_16 : f32 to vector<128x80xf32>
    %58 = arith.mulf %57, %28 : vector<128x80xf32>
    %cst_17 = arith.constant 7.500000e-01 : f32
    %59 = vector.broadcast %cst_17 : f32 to vector<128x80xf32>
    %60 = arith.addf %58, %59 : vector<128x80xf32>
    %61 = arith.mulf %56, %56 : vector<128x80xf32>
    %62 = arith.mulf %60, %61 : vector<128x80xf32>
    %c0_18 = arith.constant 0 : index
    %c0_19 = arith.constant 0 : index
    %63 = vector.load %arg6[%c0_18, %c0_19] : memref<1x80xf32, #tpu.memory_space<vmem>>, vector<1x80xf32>
    %cst_20 = arith.constant dense<0.000000e+00> : vector<1x80xf32>
    %64 = tpu.matmul %32, %44, %cst_20 {dimension_numbers = #tpu.dot_dimension_numbers<[1], [0], [0], [1], [0, 0, 1, 1], [], []>, precision = #tpu.contract_precision<fp32>} : vector<1x128xf32>, vector<128x80xf32>, vector<1x80xf32> -> vector<1x80xf32>
    %65 = arith.addf %63, %64 : vector<1x80xf32>
    %c0_21 = arith.constant 0 : index
    %c0_22 = arith.constant 0 : index
    %66 = vector.load %arg6[%c0_21, %c0_22] : memref<1x80xf32, #tpu.memory_space<vmem>>, vector<1x80xf32>
    tpu.vector_store %arg6[%c0_21, %c0_22], %65 {strides = array<i32>} : memref<1x80xf32, #tpu.memory_space<vmem>>, vector<1x80xf32>,
    %c0_23 = arith.constant 0 : index
    %c0_24 = arith.constant 0 : index
    %67 = vector.load %arg7[%c0_23, %c0_24] : memref<1x80xf32, #tpu.memory_space<vmem>>, vector<1x80xf32>
    %cst_25 = arith.constant dense<0.000000e+00> : vector<1x80xf32>
    %68 = tpu.matmul %20, %62, %cst_25 {dimension_numbers = #tpu.dot_dimension_numbers<[1], [0], [0], [1], [0, 0, 1, 1], [], []>, precision = #tpu.contract_precision<fp32>} : vector<1x128xf32>, vector<128x80xf32>, vector<1x80xf32> -> vector<1x80xf32>
    %69 = arith.addf %67, %68 : vector<1x80xf32>
    %c0_26 = arith.constant 0 : index
    %c0_27 = arith.constant 0 : index
    %70 = vector.load %arg7[%c0_26, %c0_27] : memref<1x80xf32, #tpu.memory_space<vmem>>, vector<1x80xf32>
    tpu.vector_store %arg7[%c0_26, %c0_27], %69 {strides = array<i32>} : memref<1x80xf32, #tpu.memory_space<vmem>>, vector<1x80xf32>,
    %c1_i32 = arith.constant 1 : i32
    %71 = arith.cmpi eq, %arg1, %c1_i32 : i32
    %72 = arith.extui %71 : i1 to i32
    %c0_i32_28 = arith.constant 0 : i32
    %73 = arith.cmpi ne, %72, %c0_i32_28 : i32
    scf.if %73 {
      %c0_29 = arith.constant 0 : index
      %c0_30 = arith.constant 0 : index
      %74 = vector.load %arg6[%c0_29, %c0_30] : memref<1x80xf32, #tpu.memory_space<vmem>>, vector<1x80xf32>
      %75 = vector.shape_cast %74 : vector<1x80xf32> to vector<1x1x80xf32>
      %cst_31 = arith.constant dense<0.000000e+00> : vector<1xf32>
      %76 = vector.multi_reduction <add>, %75, %cst_31 [1, 2] : vector<1x1x80xf32> to vector<1xf32>
      %77 = vector.shape_cast %76 : vector<1xf32> to vector<1x1x1xf32>
      %78 = vector.extract %77[0, 0, 0] : f32 from vector<1x1x1xf32>
      %c0_32 = arith.constant 0 : index
      %c0_33 = arith.constant 0 : index
      %79 = vector.load %arg7[%c0_32, %c0_33] : memref<1x80xf32, #tpu.memory_space<vmem>>, vector<1x80xf32>
      %80 = vector.shape_cast %79 : vector<1x80xf32> to vector<1x1x80xf32>
      %cst_34 = arith.constant dense<0.000000e+00> : vector<1xf32>
      %81 = vector.multi_reduction <add>, %80, %cst_34 [1, 2] : vector<1x1x80xf32> to vector<1xf32>
      %82 = vector.shape_cast %81 : vector<1xf32> to vector<1x1x1xf32>
      %83 = vector.extract %82[0, 0, 0] : f32 from vector<1x1x1xf32>
      %84 = tpu.iota {dimensions = array<i32: 1>} : vector<8x128xi32>
      %c0_i32_35 = arith.constant 0 : i32
      %85 = vector.broadcast %c0_i32_35 : i32 to vector<8x128xi32>
      %86 = arith.cmpi eq, %84, %85 : vector<8x128xi32>
      %c1_i32_36 = arith.constant 1 : i32
      %87 = vector.broadcast %c1_i32_36 : i32 to vector<8x128xi32>
      %88 = arith.cmpi eq, %84, %87 : vector<8x128xi32>
      %cst_37 = arith.constant 0.000000e+00 : f32
      %89 = vector.broadcast %83 : f32 to vector<8x128xf32>
      %90 = vector.broadcast %cst_37 : f32 to vector<8x128xf32>
      %91 = arith.select %88, %89, %90 : vector<8x128xi1>, vector<8x128xf32>
      %92 = vector.broadcast %78 : f32 to vector<8x128xf32>
      %93 = arith.select %86, %92, %91 : vector<8x128xi1>, vector<8x128xf32>
      %c0_38 = arith.constant 0 : index
      %c0_39 = arith.constant 0 : index
      %94 = vector.load %arg5[%c0_38, %c0_39] : memref<8x128xf32, #tpu.memory_space<vmem>>, vector<8x128xf32>
      tpu.vector_store %arg5[%c0_38, %c0_39], %93 {strides = array<i32>} : memref<8x128xf32, #tpu.memory_space<vmem>>, vector<8x128xf32>,
    } else {
    }
    return
  }
  func.func @transform_0(%arg0: i32, %arg1: i32) -> (i32, i32) {
    %c2_i32 = arith.constant 2 : i32
    %0 = arith.muli %arg0, %c2_i32 : i32
    %1 = arith.addi %0, %arg1 : i32
    %c0_i32 = arith.constant 0 : i32
    %c0_i32_0 = arith.constant 0 : i32
    return %1, %c0_i32 : i32, i32
  }
  func.func @transform_1(%arg0: i32, %arg1: i32) -> (i32, i32) {
    %c2_i32 = arith.constant 2 : i32
    %0 = arith.muli %arg0, %c2_i32 : i32
    %1 = arith.addi %0, %arg1 : i32
    %c0_i32 = arith.constant 0 : i32
    %c0_i32_0 = arith.constant 0 : i32
    return %1, %c0_i32 : i32, i32
  }
  func.func @transform_2(%arg0: i32, %arg1: i32) -> (i32, i32) {
    %c2_i32 = arith.constant 2 : i32
    %0 = arith.muli %arg0, %c2_i32 : i32
    %1 = arith.addi %0, %arg1 : i32
    %c0_i32 = arith.constant 0 : i32
    %c0_i32_0 = arith.constant 0 : i32
    return %c0_i32, %1 : i32, i32
  }
  func.func @transform_3(%arg0: i32, %arg1: i32) -> (i32, i32) {
    %c0_i32 = arith.constant 0 : i32
    %c0_i32_0 = arith.constant 0 : i32
    return %arg0, %c0_i32 : i32, i32
  }
}

</mosaic_0001>

<llo_original>
// kernel: tpu_custom_call.1
$region0: #{tpu_custom_call.1}
  #allocation0 [shape = 'u32[]', space=smem, size = 0x4, offset = 0x4, fixed_abs, tag = 'smem constant byte address 0x4 - core index']
  #allocation1 [shape = 'u32[144,128]{1,0:T(1,128)}', space=vmem, size = 0x12000, scoped, tag = 'internal scratch']
  #allocation2 [shape = 'f32[1,80]{1,0:T(1,128)}', space=vmem, size = 0x200, scoped, tag = 'scratch operand']
  #allocation3 [shape = 'f32[1,80]{1,0:T(1,128)}', space=vmem, size = 0x200, scoped, tag = 'scratch operand']
  %s0 = inlined_call_operand.vmem [shape: f32[256,80], index: 0, kind: input, shape index: {}]
  %s1 = inlined_call_operand.vmem [shape: f32[256,80], index: 1, kind: input, shape index: {}]
  %s2 = inlined_call_operand.vmem [shape: f32[1,256], index: 2, kind: input, shape index: {}]
  %s3 = inlined_call_operand.hbm [shape: f32[8,128], index: 3, kind: output, shape index: {}]
  %s4 = sld [smem:[#allocation0]]
  $region53: #{tpu_custom_call.1} parent=0
    _
  %s6 = ssub.s32 1, %s4
  %s7 = scalar_select 0, %s6, %s4
  $region1: #{tpu_custom_call.1} parent=0
    #allocation4 [shape = 'u8[4096]{0}', space=vmem, size = 0x1000, scoped, tag = 'output window, operand 0, single buffered']
    #allocation5 [shape = 's32[2]{0}', space=sflag, size = 0x8, scoped, tag = 'scoped memory for tpu_custom_call.1']
    %8 = vsyncpa [#allocation5], 0
    loop: start=0, step=1, limit=4
    $region2: #{tpu_custom_call.1} parent=1 // loop_pre_header
      _
    $region3: #{tpu_custom_call.1} parent=1 // loop_header
      %s10 = sphi 0, %s14
      %p11 = scmp.ge.s32.totalorder %s10, 4
      %s17 = sphi 0, %s29
      %s18 = sphi 0, %s25
      %s19 = sphi 0, %s17
      %s20 = sphi 0, %s18
      %s21 = sphi 0, %s19
      %s22 = sphi 0, %s20
      %s36 = sphi 0, %s38
      %s39 = sphi 0, %s36
      %s40 = sphi 0, %s39
      %s56 = sphi 0, %s40
      %s66 = sphi 0, %s68
      %s69 = sphi 0, %s66
      %s70 = sphi 0, %s69
      %s86 = sphi 0, %s70
      %s96 = sphi 0, %s98
      %s99 = sphi 0, %s96
      %s100 = sphi 0, %s99
      %s116 = sphi 0, %s100
      %s122 = sphi 0, %s124
      %s125 = sphi 0, %s122
      %s126 = sphi 0, %s125
      %s142 = sphi 0, %s126
    $region4: #{tpu_custom_call.1} parent=1 // loop_header_branch
      %13 = sbr.rel (%p11) target = $region8
    $region5: #{tpu_custom_call.1} parent=1 // loop_body
      %s15 = ssub.s32 %s10, 1
      %s16 = ssub.s32 %s10, 2
      %s23 = sadd.s32 1, %s18
      %p24 = scmp.ge.s32.totalorder %s23, 2
      %s25 = scalar_select %p24, 0, %s23
      %s26 = sadd.s32 1, %s17
      %s27 = scalar_select %p24, %s26, %s17
      %p28 = scmp.ge.s32.totalorder %s27, 1
      %s29 = scalar_select %p28, 0, %s27
      %s30 = smul.u32 %s17, 2
      %s31 = sadd.s32 %s30, %s18
      %s32 = smul.u32 %s29, 2
      %s33 = sadd.s32 %s32, %s25
      %s34 = ssub.s32 %s31, %s33
      %p35 = scmp.eq.s32.totalorder %s34, 0
      %s37 = sadd.s32 %s36, 1
      %s38 = scalar_select %p35, %s36, %s37
      %p41 = pneg %p35
      %p42 = scmp.eq.s32.totalorder %s10, 1
      %p43 = por %p41, %p42
      %p44 = scmp.ne.s32.totalorder %s36, %s39
      %p45 = scmp.eq.s32.totalorder %s10, 0
      %p46 = por %p44, %p45
      %p47 = scmp.ne.s32.totalorder %s36, %s39
      %p48 = scmp.eq.s32.totalorder %s15, 1
      %p49 = por %p47, %p48
      %p50 = scmp.ne.s32.totalorder %s39, %s40
      %p51 = scmp.eq.s32.totalorder %s15, 0
      %p52 = por %p50, %p51
      %p53 = scmp.ne.s32.totalorder %s39, %s40
      %p54 = scmp.eq.s32.totalorder %s16, 1
      %p55 = por %p53, %p54
      %p57 = scmp.ne.s32.totalorder %s40, %s56
      %p58 = scmp.eq.s32.totalorder %s16, 0
      %p59 = por %p57, %p58
      %s60 = smul.u32 %s17, 2
      %s61 = sadd.s32 %s60, %s18
      %s62 = smul.u32 %s29, 2
      %s63 = sadd.s32 %s62, %s25
      %s64 = ssub.s32 %s61, %s63
      %p65 = scmp.eq.s32.totalorder %s64, 0
      %s67 = sadd.s32 %s66, 1
      %s68 = scalar_select %p65, %s66, %s67
      %p71 = pneg %p65
      %p72 = scmp.eq.s32.totalorder %s10, 1
      %p73 = por %p71, %p72
      %p74 = scmp.ne.s32.totalorder %s66, %s69
      %p75 = scmp.eq.s32.totalorder %s10, 0
      %p76 = por %p74, %p75
      %p77 = scmp.ne.s32.totalorder %s66, %s69
      %p78 = scmp.eq.s32.totalorder %s15, 1
      %p79 = por %p77, %p78
      %p80 = scmp.ne.s32.totalorder %s69, %s70
      %p81 = scmp.eq.s32.totalorder %s15, 0
      %p82 = por %p80, %p81
      %p83 = scmp.ne.s32.totalorder %s69, %s70
      %p84 = scmp.eq.s32.totalorder %s16, 1
      %p85 = por %p83, %p84
      %p87 = scmp.ne.s32.totalorder %s70, %s86
      %p88 = scmp.eq.s32.totalorder %s16, 0
      %p89 = por %p87, %p88
      %s90 = smul.u32 %s17, 2
      %s91 = sadd.s32 %s90, %s18
      %s92 = smul.u32 %s29, 2
      %s93 = sadd.s32 %s92, %s25
      %s94 = ssub.s32 %s91, %s93
      %p95 = scmp.eq.s32.totalorder %s94, 0
      %s97 = sadd.s32 %s96, 1
      %s98 = scalar_select %p95, %s96, %s97
      %p101 = pneg %p95
      %p102 = scmp.eq.s32.totalorder %s10, 1
      %p103 = por %p101, %p102
      %p104 = scmp.ne.s32.totalorder %s96, %s99
      %p105 = scmp.eq.s32.totalorder %s10, 0
      %p106 = por %p104, %p105
      %p107 = scmp.ne.s32.totalorder %s96, %s99
      %p108 = scmp.eq.s32.totalorder %s15, 1
      %p109 = por %p107, %p108
      %p110 = scmp.ne.s32.totalorder %s99, %s100
      %p111 = scmp.eq.s32.totalorder %s15, 0
      %p112 = por %p110, %p111
      %p113 = scmp.ne.s32.totalorder %s99, %s100
      %p114 = scmp.eq.s32.totalorder %s16, 1
      %p115 = por %p113, %p114
      %p117 = scmp.ne.s32.totalorder %s100, %s116
      %p118 = scmp.eq.s32.totalorder %s16, 0
      %p119 = por %p117, %p118
      %s120 = ssub.s32 %s17, %s29
      %p121 = scmp.eq.s32.totalorder %s120, 0
      %s123 = sadd.s32 %s122, 1
      %s124 = scalar_select %p121, %s122, %s123
      %p127 = pneg %p121
      %p128 = scmp.eq.s32.totalorder %s10, 1
      %p129 = por %p127, %p128
      %p130 = scmp.ne.s32.totalorder %s122, %s125
      %p131 = scmp.eq.s32.totalorder %s10, 0
      %p132 = por %p130, %p131
      %p133 = scmp.ne.s32.totalorder %s122, %s125
      %p134 = scmp.eq.s32.totalorder %s15, 1
      %p135 = por %p133, %p134
      %p136 = scmp.ne.s32.totalorder %s125, %s126
      %p137 = scmp.eq.s32.totalorder %s15, 0
      %p138 = por %p136, %p137
      %p139 = scmp.ne.s32.totalorder %s125, %s126
      %p140 = scmp.eq.s32.totalorder %s16, 1
      %p141 = por %p139, %p140
      %p143 = scmp.ne.s32.totalorder %s126, %s142
      %p144 = scmp.eq.s32.totalorder %s16, 0
      %p145 = por %p143, %p144
      %p146 = scmp.le.s32.totalorder 1, %s10
      %p147 = scmp.lt.s32.totalorder %s10, 3
      %p148 = pnand %p146, %p147
      %p149 = pneg %p148
      // Predicated region
      $region9: #{tpu_custom_call.1} parent=5 // pred_check
        _
      $region10: #{tpu_custom_call.1} parent=5 // pred_check_branch
        %151 = sbr.rel (%p148) target = $region12
      $region11: #{tpu_custom_call.1} parent=5 // pred_region
        %s152 = ssub.s32 %s10, 1
      $region12: #{tpu_custom_call.1} parent=5 // pred_fallthru
        _
      %p153 = scmp.lt.s32.totalorder %s10, 2
      // Predicated region
      $region13: #{tpu_custom_call.1} parent=5 // pred_check
        %p154 = pneg %p153
      $region14: #{tpu_custom_call.1} parent=5 // pred_check_branch
        %156 = sbr.rel (%p154) target = $region16
      $region15: #{tpu_custom_call.1} parent=5 // pred_region
        // Predicated region
        $region17: #{tpu_custom_call.1} parent=15 // pred_check
          %p157 = pneg %p46
        $region18: #{tpu_custom_call.1} parent=15 // pred_check_branch
          %159 = sbr.rel (%p157) target = $region20
        $region19: #{tpu_custom_call.1} parent=15 // pred_region
          %s160 = smul.u32 %s17, 2
          %s161 = sadd.s32 %s160, %s18
          %s162 = smul.u32 16, %s161
          %p163 = scmp.lt.s32.totalorder %s162, 31
          %s164 = scalar_select %p163, %s162, 31
          %s165 = smul.addr %s164, 8
          %s166 = scalar_lea.vmem %s0, %s165
          %s167 = smul.u32 %s17, 2
          %s168 = sadd.s32 %s167, %s18
          %s169 = smul.u32 16, %s168
        $region20: #{tpu_custom_call.1} parent=15 // pred_fallthru
          _
        // Predicated region
        $region21: #{tpu_custom_call.1} parent=15 // pred_check
          %p170 = pneg %p76
        $region22: #{tpu_custom_call.1} parent=15 // pred_check_branch
          %172 = sbr.rel (%p170) target = $region24
        $region23: #{tpu_custom_call.1} parent=15 // pred_region
          %s173 = smul.u32 %s17, 2
          %s174 = sadd.s32 %s173, %s18
          %s175 = smul.u32 16, %s174
          %p176 = scmp.lt.s32.totalorder %s175, 31
          %s177 = scalar_select %p176, %s175, 31
          %s178 = smul.addr %s177, 8
          %s179 = scalar_lea.vmem %s1, %s178
          %s180 = smul.u32 %s17, 2
          %s181 = sadd.s32 %s180, %s18
          %s182 = smul.u32 16, %s181
        $region24: #{tpu_custom_call.1} parent=15 // pred_fallthru
          _
        // Predicated region
        $region25: #{tpu_custom_call.1} parent=15 // pred_check
          %p183 = pneg %p106
        $region26: #{tpu_custom_call.1} parent=15 // pred_check_branch
          %185 = sbr.rel (%p183) target = $region28
        $region27: #{tpu_custom_call.1} parent=15 // pred_region
          %s186 = smul.u32 %s17, 2
          %s187 = sadd.s32 %s186, %s18
          %p188 = scmp.lt.s32.totalorder %s187, 1
          %s189 = scalar_select %p188, %s187, 1
          %s190 = scalar_lea.vmem %s2, %s189
          %s191 = smul.u32 %s17, 2
          %s192 = sadd.s32 %s191, %s18
        $region28: #{tpu_custom_call.1} parent=15 // pred_fallthru
          _
      $region16: #{tpu_custom_call.1} parent=5 // pred_fallthru
        _
      %p193 = scmp.le.s32.totalorder 1, %s10
      %p194 = scmp.lt.s32.totalorder %s10, 3
      %p195 = pnand %p193, %p194
      %p196 = pneg %p195
      // Predicated region
      $region29: #{tpu_custom_call.1} parent=5 // pred_check
        _
      $region30: #{tpu_custom_call.1} parent=5 // pred_check_branch
        %198 = sbr.rel (%p195) target = $region32
      $region31: #{tpu_custom_call.1} parent=5 // pred_region
        %s199 = ssub.s32 %s10, 1
        %s200 = smul.u32 %s19, 2
        %s201 = sadd.s32 %s200, %s20
        %s202 = smul.u32 16, %s201
        %p203 = scmp.lt.s32.totalorder %s202, 31
        %s204 = scalar_select %p203, %s202, 31
        %s205 = smul.addr %s204, 8
        %s206 = scalar_lea.vmem %s0, %s205
        %p207 = pneg %p52
        %p208 = pneg %p49
        %s209 = smul.u32 %s19, 2
        %s210 = sadd.s32 %s209, %s20
        %s211 = smul.u32 16, %s210
        %p212 = scmp.lt.s32.totalorder %s211, 31
        %s213 = scalar_select %p212, %s211, 31
        %s214 = smul.addr %s213, 8
        %s215 = scalar_lea.vmem %s1, %s214
        %p216 = pneg %p82
        %p217 = pneg %p79
        %s218 = smul.u32 %s19, 2
        %s219 = sadd.s32 %s218, %s20
        %p220 = scmp.lt.s32.totalorder %s219, 1
        %s221 = scalar_select %p220, %s219, 1
        %s222 = scalar_lea.vmem %s2, %s221
        %p223 = pneg %p112
        %p224 = pneg %p109
        %p225 = pneg %p138
        %p226 = pneg %p135
        %s227 = smul.u32 %s19, 2
        %s228 = sadd.s32 %s227, %s20
        %s229 = smul.u32 16, %s228
        %p230 = scmp.lt.s32.totalorder %s229, 31
        %s231 = scalar_select %p230, %s229, 31
        %s232 = smul.addr %s231, 8
        %s233 = scalar_lea.vmem %s0, %s232
        %s234 = smul.u32 %s19, 2
        %s235 = sadd.s32 %s234, %s20
        %s236 = smul.u32 16, %s235
        %s237 = smul.u32 %s19, 2
        %s238 = sadd.s32 %s237, %s20
        %s239 = smul.u32 16, %s238
        %p240 = scmp.lt.s32.totalorder %s239, 31
        %s241 = scalar_select %p240, %s239, 31
        %s242 = smul.addr %s241, 8
        %s243 = scalar_lea.vmem %s1, %s242
        %s244 = smul.u32 %s19, 2
        %s245 = sadd.s32 %s244, %s20
        %s246 = smul.u32 16, %s245
        %s247 = smul.u32 %s19, 2
        %s248 = sadd.s32 %s247, %s20
        %p249 = scmp.lt.s32.totalorder %s248, 1
        %s250 = scalar_select %p249, %s248, 1
        %s251 = scalar_lea.vmem %s2, %s250
        %s252 = smul.u32 %s19, 2
        %s253 = sadd.s32 %s252, %s20
        %p254 = scmp.eq.s32.totalorder %s20, 0
        // Predicated region
        $region33: #{tpu_custom_call.1} parent=31 // pred_check
          %p255 = pneg %p254
        $region34: #{tpu_custom_call.1} parent=31 // pred_check_branch
          %257 = sbr.rel (%p255) target = $region36
        $region35: #{tpu_custom_call.1} parent=31 // pred_region
          %vm258 = vcmask 647168
          %259 = vst.msk [vmem:[#allocation2] sm:$0x1] %vm258, 0.0
          %260 = vst.msk [vmem:[#allocation3] sm:$0x1] %vm258, 0.0
        $region36: #{tpu_custom_call.1} parent=31 // pred_fallthru
          _
        %s261 = smul.u32 %s19, 2
        %s262 = sadd.s32 %s261, %s20
        %s263 = smul.u32 %s262, 128
        %v264 = vld [vmem:[%s233] sm:$0xff]
        %v265 = vld [vmem:[%s233 + $0x8] sm:$0xff]
        %v266 = vld [vmem:[%s233 + $0x10] sm:$0xff]
        %v267 = vld [vmem:[%s233 + $0x18] sm:$0xff]
        %v268 = vld [vmem:[%s233 + $0x20] sm:$0xff]
        %v269 = vld [vmem:[%s233 + $0x28] sm:$0xff]
        %v270 = vld [vmem:[%s233 + $0x30] sm:$0xff]
        %v271 = vld [vmem:[%s233 + $0x38] sm:$0xff]
        %v272 = vld [vmem:[%s233 + $0x40] sm:$0xff]
        %v273 = vld [vmem:[%s233 + $0x48] sm:$0xff]
        %v274 = vld [vmem:[%s233 + $0x50] sm:$0xff]
        %v275 = vld [vmem:[%s233 + $0x58] sm:$0xff]
        %v276 = vld [vmem:[%s233 + $0x60] sm:$0xff]
        %v277 = vld [vmem:[%s233 + $0x68] sm:$0xff]
        %v278 = vld [vmem:[%s233 + $0x70] sm:$0xff]
        %v279 = vld [vmem:[%s233 + $0x78] sm:$0xff]
        %v280 = vld [vmem:[%s243] sm:$0xff]
        %v281 = vld [vmem:[%s243 + $0x8] sm:$0xff]
        %v282 = vld [vmem:[%s243 + $0x10] sm:$0xff]
        %v283 = vld [vmem:[%s243 + $0x18] sm:$0xff]
        %v284 = vld [vmem:[%s243 + $0x20] sm:$0xff]
        %v285 = vld [vmem:[%s243 + $0x28] sm:$0xff]
        %v286 = vld [vmem:[%s243 + $0x30] sm:$0xff]
        %v287 = vld [vmem:[%s243 + $0x38] sm:$0xff]
        %v288 = vld [vmem:[%s243 + $0x40] sm:$0xff]
        %v289 = vld [vmem:[%s243 + $0x48] sm:$0xff]
        %v290 = vld [vmem:[%s243 + $0x50] sm:$0xff]
        %v291 = vld [vmem:[%s243 + $0x58] sm:$0xff]
        %v292 = vld [vmem:[%s243 + $0x60] sm:$0xff]
        %v293 = vld [vmem:[%s243 + $0x68] sm:$0xff]
        %v294 = vld [vmem:[%s243 + $0x70] sm:$0xff]
        %v295 = vld [vmem:[%s243 + $0x78] sm:$0xff]
        %v296 = vld [vmem:[%s251] sm:$0x1]
        %v297 = vlaneseq
        %v298 = vshrl.u32 %v297, 7
        %v299 = vadd.s32 %v298, 8
        %v300 = vadd.s32 %v298, 16
        %v301 = vadd.s32 %v298, 24
        %v302 = vadd.s32 %v298, 32
        %v303 = vadd.s32 %v298, 40
        %v304 = vadd.s32 %v298, 48
        %v305 = vadd.s32 %v298, 56
        %v306 = vadd.s32 %v298, 64
        %v307 = vadd.s32 %v298, 72
        %v308 = vadd.s32 %v298, 80
        %v309 = vadd.s32 %v298, 88
        %v310 = vadd.s32 %v298, 96
        %v311 = vadd.s32 %v298, 104
        %v312 = vadd.s32 %v298, 112
        %v313 = vadd.s32 %v298, 120
        %v314 = vstv %s263
        %v315 = vadd.s32 %v314, %v298
        %v316 = vadd.s32 %v314, %v299
        %v317 = vadd.s32 %v314, %v300
        %v318 = vadd.s32 %v314, %v301
        %v319 = vadd.s32 %v314, %v302
        %v320 = vadd.s32 %v314, %v303
        %v321 = vadd.s32 %v314, %v304
        %v322 = vadd.s32 %v314, %v305
        %v323 = vadd.s32 %v314, %v306
        %v324 = vadd.s32 %v314, %v307
        %v325 = vadd.s32 %v314, %v308
        %v326 = vadd.s32 %v314, %v309
        %v327 = vadd.s32 %v314, %v310
        %v328 = vadd.s32 %v314, %v311
        %v329 = vadd.s32 %v314, %v312
        %v330 = vadd.s32 %v314, %v313
        %vm331 = vcmp.lt.s32.totalorder %v315, 256
        %vm332 = vcmp.lt.s32.totalorder %v316, 256
        %vm333 = vcmp.lt.s32.totalorder %v317, 256
        %vm334 = vcmp.lt.s32.totalorder %v318, 256
        %vm335 = vcmp.lt.s32.totalorder %v319, 256
        %vm336 = vcmp.lt.s32.totalorder %v320, 256
        %vm337 = vcmp.lt.s32.totalorder %v321, 256
        %vm338 = vcmp.lt.s32.totalorder %v322, 256
        %vm339 = vcmp.lt.s32.totalorder %v323, 256
        %vm340 = vcmp.lt.s32.totalorder %v324, 256
        %vm341 = vcmp.lt.s32.totalorder %v325, 256
        %vm342 = vcmp.lt.s32.totalorder %v326, 256
        %vm343 = vcmp.lt.s32.totalorder %v327, 256
        %vm344 = vcmp.lt.s32.totalorder %v328, 256
        %vm345 = vcmp.lt.s32.totalorder %v329, 256
        %vm346 = vcmp.lt.s32.totalorder %v330, 256
        %v347 = vlaneseq
        %v348 = vand.u32 %v347, 127
        %v349 = vadd.s32 %v314, %v348
        %vm350 = vcmp.lt.s32.totalorder %v349, 256
        %v351 = vsel %vm350, 1, 0
        %v352 = vcvt.s32.f32 %v351
        %v353 = vsel %vm331, 1, 0
        %v354 = vsel %vm332, 1, 0
        %v355 = vsel %vm333, 1, 0
        %v356 = vsel %vm334, 1, 0
        %v357 = vsel %vm335, 1, 0
        %v358 = vsel %vm336, 1, 0
        %v359 = vsel %vm337, 1, 0
        %v360 = vsel %vm338, 1, 0
        %v361 = vsel %vm339, 1, 0
        %v362 = vsel %vm340, 1, 0
        %v363 = vsel %vm341, 1, 0
        %v364 = vsel %vm342, 1, 0
        %v365 = vsel %vm343, 1, 0
        %v366 = vsel %vm344, 1, 0
        %v367 = vsel %vm345, 1, 0
        %v368 = vsel %vm346, 1, 0
        %vm369 = vcmp.eq.s32.totalorder %v353, 1
        %vm370 = vcmp.eq.s32.totalorder %v354, 1
        %vm371 = vcmp.eq.s32.totalorder %v355, 1
        %vm372 = vcmp.eq.s32.totalorder %v356, 1
        %vm373 = vcmp.eq.s32.totalorder %v357, 1
        %vm374 = vcmp.eq.s32.totalorder %v358, 1
        %vm375 = vcmp.eq.s32.totalorder %v359, 1
        %vm376 = vcmp.eq.s32.totalorder %v360, 1
        %vm377 = vcmp.eq.s32.totalorder %v361, 1
        %vm378 = vcmp.eq.s32.totalorder %v362, 1
        %vm379 = vcmp.eq.s32.totalorder %v363, 1
        %vm380 = vcmp.eq.s32.totalorder %v364, 1
        %vm381 = vcmp.eq.s32.totalorder %v365, 1
        %vm382 = vcmp.eq.s32.totalorder %v366, 1
        %vm383 = vcmp.eq.s32.totalorder %v367, 1
        %vm384 = vcmp.eq.s32.totalorder %v368, 1
        %v385 = vsel %vm369, %v264, 0.0
        %v386 = vsel %vm370, %v265, 0.0
        %v387 = vsel %vm371, %v266, 0.0
        %v388 = vsel %vm372, %v267, 0.0
        %v389 = vsel %vm373, %v268, 0.0
        %v390 = vsel %vm374, %v269, 0.0
        %v391 = vsel %vm375, %v270, 0.0
        %v392 = vsel %vm376, %v271, 0.0
        %v393 = vsel %vm377, %v272, 0.0
        %v394 = vsel %vm378, %v273, 0.0
        %v395 = vsel %vm379, %v274, 0.0
        %v396 = vsel %vm380, %v275, 0.0
        %v397 = vsel %vm381, %v276, 0.0
        %v398 = vsel %vm382, %v277, 0.0
        %v399 = vsel %vm383, %v278, 0.0
        %v400 = vsel %vm384, %v279, 0.0
        %v401 = vsel %vm369, %v280, 0.0
        %v402 = vsel %vm370, %v281, 0.0
        %v403 = vsel %vm371, %v282, 0.0
        %v404 = vsel %vm372, %v283, 0.0
        %v405 = vsel %vm373, %v284, 0.0
        %v406 = vsel %vm374, %v285, 0.0
        %v407 = vsel %vm375, %v286, 0.0
        %v408 = vsel %vm376, %v287, 0.0
        %v409 = vsel %vm377, %v288, 0.0
        %v410 = vsel %vm378, %v289, 0.0
        %v411 = vsel %vm379, %v290, 0.0
        %v412 = vsel %vm380, %v291, 0.0
        %v413 = vsel %vm381, %v292, 0.0
        %v414 = vsel %vm382, %v293, 0.0
        %v415 = vsel %vm383, %v294, 0.0
        %v416 = vsel %vm384, %v295, 0.0
        %v417 = vsel %vm350, %v296, 0.0
        %v418 = vand.u32 2147483647, %v385
        %v419 = vand.u32 2147483647, %v386
        %v420 = vand.u32 2147483647, %v387
        %v421 = vand.u32 2147483647, %v388
        %v422 = vand.u32 2147483647, %v389
        %v423 = vand.u32 2147483647, %v390
        %v424 = vand.u32 2147483647, %v391
        %v425 = vand.u32 2147483647, %v392
        %v426 = vand.u32 2147483647, %v393
        %v427 = vand.u32 2147483647, %v394
        %v428 = vand.u32 2147483647, %v395
        %v429 = vand.u32 2147483647, %v396
        %v430 = vand.u32 2147483647, %v397
        %v431 = vand.u32 2147483647, %v398
        %v432 = vand.u32 2147483647, %v399
        %v433 = vand.u32 2147483647, %v400
        %v434 = vsub.f32 0.0, %v418
        %v435 = vsub.f32 0.0, %v419
        %v436 = vsub.f32 0.0, %v420
        %v437 = vsub.f32 0.0, %v421
        %v438 = vsub.f32 0.0, %v422
        %v439 = vsub.f32 0.0, %v423
        %v440 = vsub.f32 0.0, %v424
        %v441 = vsub.f32 0.0, %v425
        %v442 = vsub.f32 0.0, %v426
        %v443 = vsub.f32 0.0, %v427
        %v444 = vsub.f32 0.0, %v428
        %v445 = vsub.f32 0.0, %v429
        %v446 = vsub.f32 0.0, %v430
        %v447 = vsub.f32 0.0, %v431
        %v448 = vsub.f32 0.0, %v432
        %v449 = vsub.f32 0.0, %v433
        %v450 = vmul.f32 %v434, 1.442695
        %v451 = vpow.pop %v450
        %v452 = vmul.f32 %v435, 1.442695
        %v453 = vpow.pop %v452
        %v454 = vmul.f32 %v436, 1.442695
        %v455 = vpow.pop %v454
        %v456 = vmul.f32 %v437, 1.442695
        %v457 = vpow.pop %v456
        %v458 = vmul.f32 %v438, 1.442695
        %v459 = vpow.pop %v458
        %v460 = vmul.f32 %v439, 1.442695
        %v461 = vpow.pop %v460
        %v462 = vmul.f32 %v440, 1.442695
        %v463 = vpow.pop %v462
        %v464 = vmul.f32 %v441, 1.442695
        %v465 = vpow.pop %v464
        %v466 = vmul.f32 %v442, 1.442695
        %v467 = vpow.pop %v466
        %v468 = vmul.f32 %v443, 1.442695
        %v469 = vpow.pop %v468
        %v470 = vmul.f32 %v444, 1.442695
        %v471 = vpow.pop %v470
        %v472 = vmul.f32 %v445, 1.442695
        %v473 = vpow.pop %v472
        %v474 = vmul.f32 %v446, 1.442695
        %v475 = vpow.pop %v474
        %v476 = vmul.f32 %v447, 1.442695
        %v477 = vpow.pop %v476
        %v478 = vmul.f32 %v448, 1.442695
        %v479 = vpow.pop %v478
        %v480 = vmul.f32 %v449, 1.442695
        %v481 = vpow.pop %v480
        %v482 = vmax.f32 %v385, 0.0
        %v483 = vmax.f32 %v386, 0.0
        %v484 = vmax.f32 %v387, 0.0
        %v485 = vmax.f32 %v388, 0.0
        %v486 = vmax.f32 %v389, 0.0
        %v487 = vmax.f32 %v390, 0.0
        %v488 = vmax.f32 %v391, 0.0
        %v489 = vmax.f32 %v392, 0.0
        %v490 = vmax.f32 %v393, 0.0
        %v491 = vmax.f32 %v394, 0.0
        %v492 = vmax.f32 %v395, 0.0
        %v493 = vmax.f32 %v396, 0.0
        %v494 = vmax.f32 %v397, 0.0
        %v495 = vmax.f32 %v398, 0.0
        %v496 = vmax.f32 %v399, 0.0
        %v497 = vmax.f32 %v400, 0.0
        %v498 = vmul.f32 %v385, %v401
        %v499 = vmul.f32 %v386, %v402
        %v500 = vmul.f32 %v387, %v403
        %v501 = vmul.f32 %v388, %v404
        %v502 = vmul.f32 %v389, %v405
        %v503 = vmul.f32 %v390, %v406
        %v504 = vmul.f32 %v391, %v407
        %v505 = vmul.f32 %v392, %v408
        %v506 = vmul.f32 %v393, %v409
        %v507 = vmul.f32 %v394, %v410
        %v508 = vmul.f32 %v395, %v411
        %v509 = vmul.f32 %v396, %v412
        %v510 = vmul.f32 %v397, %v413
        %v511 = vmul.f32 %v398, %v414
        %v512 = vmul.f32 %v399, %v415
        %v513 = vmul.f32 %v400, %v416
        %v514 = vsub.f32 %v482, %v498
        %v515 = vsub.f32 %v483, %v499
        %v516 = vsub.f32 %v484, %v500
        %v517 = vsub.f32 %v485, %v501
        %v518 = vsub.f32 %v486, %v502
        %v519 = vsub.f32 %v487, %v503
        %v520 = vsub.f32 %v488, %v504
        %v521 = vsub.f32 %v489, %v505
        %v522 = vsub.f32 %v490, %v506
        %v523 = vsub.f32 %v491, %v507
        %v524 = vsub.f32 %v492, %v508
        %v525 = vsub.f32 %v493, %v509
        %v526 = vsub.f32 %v494, %v510
        %v527 = vsub.f32 %v495, %v511
        %v528 = vsub.f32 %v496, %v512
        %v529 = vsub.f32 %v497, %v513
        %v530 = vadd.f32 %v451, 1.0
        %v531 = vadd.f32 %v453, 1.0
        %v532 = vadd.f32 %v455, 1.0
        %v533 = vadd.f32 %v457, 1.0
        %v534 = vadd.f32 %v459, 1.0
        %v535 = vadd.f32 %v461, 1.0
        %v536 = vadd.f32 %v463, 1.0
        %v537 = vadd.f32 %v465, 1.0
        %v538 = vadd.f32 %v467, 1.0
        %v539 = vadd.f32 %v469, 1.0
        %v540 = vadd.f32 %v471, 1.0
        %v541 = vadd.f32 %v473, 1.0
        %v542 = vadd.f32 %v475, 1.0
        %v543 = vadd.f32 %v477, 1.0
        %v544 = vadd.f32 %v479, 1.0
        %v545 = vadd.f32 %v481, 1.0
        %v546 = vlog2.pop %v530
        %v547 = vmul.f32 %v546, 0.6931472
        %v548 = vlog2.pop %v531
        %v549 = vmul.f32 %v548, 0.6931472
        %v550 = vlog2.pop %v532
        %v551 = vmul.f32 %v550, 0.6931472
        %v552 = vlog2.pop %v533
        %v553 = vmul.f32 %v552, 0.6931472
        %v554 = vlog2.pop %v534
        %v555 = vmul.f32 %v554, 0.6931472
        %v556 = vlog2.pop %v535
        %v557 = vmul.f32 %v556, 0.6931472
        %v558 = vlog2.pop %v536
        %v559 = vmul.f32 %v558, 0.6931472
        %v560 = vlog2.pop %v537
        %v561 = vmul.f32 %v560, 0.6931472
        %v562 = vlog2.pop %v538
        %v563 = vmul.f32 %v562, 0.6931472
        %v564 = vlog2.pop %v539
        %v565 = vmul.f32 %v564, 0.6931472
        %v566 = vlog2.pop %v540
        %v567 = vmul.f32 %v566, 0.6931472
        %v568 = vlog2.pop %v541
        %v569 = vmul.f32 %v568, 0.6931472
        %v570 = vlog2.pop %v542
        %v571 = vmul.f32 %v570, 0.6931472
        %v572 = vlog2.pop %v543
        %v573 = vmul.f32 %v572, 0.6931472
        %v574 = vlog2.pop %v544
        %v575 = vmul.f32 %v574, 0.6931472
        %v576 = vlog2.pop %v545
        %v577 = vmul.f32 %v576, 0.6931472
        %v578 = vadd.f32 %v514, %v547
        %v579 = vadd.f32 %v515, %v549
        %v580 = vadd.f32 %v516, %v551
        %v581 = vadd.f32 %v517, %v553
        %v582 = vadd.f32 %v518, %v555
        %v583 = vadd.f32 %v519, %v557
        %v584 = vadd.f32 %v520, %v559
        %v585 = vadd.f32 %v521, %v561
        %v586 = vadd.f32 %v522, %v563
        %v587 = vadd.f32 %v523, %v565
        %v588 = vadd.f32 %v524, %v567
        %v589 = vadd.f32 %v525, %v569
        %v590 = vadd.f32 %v526, %v571
        %v591 = vadd.f32 %v527, %v573
        %v592 = vadd.f32 %v528, %v575
        %v593 = vadd.f32 %v529, %v577
        %v594 = vrcp.pop %v530
        %v595 = vrcp.pop %v531
        %v596 = vrcp.pop %v532
        %v597 = vrcp.pop %v533
        %v598 = vrcp.pop %v534
        %v599 = vrcp.pop %v535
        %v600 = vrcp.pop %v536
        %v601 = vrcp.pop %v537
        %v602 = vrcp.pop %v538
        %v603 = vrcp.pop %v539
        %v604 = vrcp.pop %v540
        %v605 = vrcp.pop %v541
        %v606 = vrcp.pop %v542
        %v607 = vrcp.pop %v543
        %v608 = vrcp.pop %v544
        %v609 = vrcp.pop %v545
        %vm610 = vcmp.ge.f32.partialorder %v385, 0.0
        %vm611 = vcmp.ge.f32.partialorder %v386, 0.0
        %vm612 = vcmp.ge.f32.partialorder %v387, 0.0
        %vm613 = vcmp.ge.f32.partialorder %v388, 0.0
        %vm614 = vcmp.ge.f32.partialorder %v389, 0.0
        %vm615 = vcmp.ge.f32.partialorder %v390, 0.0
        %vm616 = vcmp.ge.f32.partialorder %v391, 0.0
        %vm617 = vcmp.ge.f32.partialorder %v392, 0.0
        %vm618 = vcmp.ge.f32.partialorder %v393, 0.0
        %vm619 = vcmp.ge.f32.partialorder %v394, 0.0
        %vm620 = vcmp.ge.f32.partialorder %v395, 0.0
        %vm621 = vcmp.ge.f32.partialorder %v396, 0.0
        %vm622 = vcmp.ge.f32.partialorder %v397, 0.0
        %vm623 = vcmp.ge.f32.partialorder %v398, 0.0
        %vm624 = vcmp.ge.f32.partialorder %v399, 0.0
        %vm625 = vcmp.ge.f32.partialorder %v400, 0.0
        %v626 = vmul.f32 %v451, %v594
        %v627 = vmul.f32 %v453, %v595
        %v628 = vmul.f32 %v455, %v596
        %v629 = vmul.f32 %v457, %v597
        %v630 = vmul.f32 %v459, %v598
        %v631 = vmul.f32 %v461, %v599
        %v632 = vmul.f32 %v463, %v600
        %v633 = vmul.f32 %v465, %v601
        %v634 = vmul.f32 %v467, %v602
        %v635 = vmul.f32 %v469, %v603
        %v636 = vmul.f32 %v471, %v604
        %v637 = vmul.f32 %v473, %v605
        %v638 = vmul.f32 %v475, %v606
        %v639 = vmul.f32 %v477, %v607
        %v640 = vmul.f32 %v479, %v608
        %v641 = vmul.f32 %v481, %v609
        %v642 = vsel %vm610, %v594, %v626
        %v643 = vsel %vm611, %v595, %v627
        %v644 = vsel %vm612, %v596, %v628
        %v645 = vsel %vm613, %v597, %v629
        %v646 = vsel %vm614, %v598, %v630
        %v647 = vsel %vm615, %v599, %v631
        %v648 = vsel %vm616, %v600, %v632
        %v649 = vsel %vm617, %v601, %v633
        %v650 = vsel %vm618, %v602, %v634
        %v651 = vsel %vm619, %v603, %v635
        %v652 = vsel %vm620, %v604, %v636
        %v653 = vsel %vm621, %v605, %v637
        %v654 = vsel %vm622, %v606, %v638
        %v655 = vsel %vm623, %v607, %v639
        %v656 = vsel %vm624, %v608, %v640
        %v657 = vsel %vm625, %v609, %v641
        %v658 = vadd.f32 %v642, %v401
        %v659 = vadd.f32 %v643, %v402
        %v660 = vadd.f32 %v644, %v403
        %v661 = vadd.f32 %v645, %v404
        %v662 = vadd.f32 %v646, %v405
        %v663 = vadd.f32 %v647, %v406
        %v664 = vadd.f32 %v648, %v407
        %v665 = vadd.f32 %v649, %v408
        %v666 = vadd.f32 %v650, %v409
        %v667 = vadd.f32 %v651, %v410
        %v668 = vadd.f32 %v652, %v411
        %v669 = vadd.f32 %v653, %v412
        %v670 = vadd.f32 %v654, %v413
        %v671 = vadd.f32 %v655, %v414
        %v672 = vadd.f32 %v656, %v415
        %v673 = vadd.f32 %v657, %v416
        %v674 = vmul.f32 %v642, 2.0
        %v675 = vmul.f32 %v643, 2.0
        %v676 = vmul.f32 %v644, 2.0
        %v677 = vmul.f32 %v645, 2.0
        %v678 = vmul.f32 %v646, 2.0
        %v679 = vmul.f32 %v647, 2.0
        %v680 = vmul.f32 %v648, 2.0
        %v681 = vmul.f32 %v649, 2.0
        %v682 = vmul.f32 %v650, 2.0
        %v683 = vmul.f32 %v651, 2.0
        %v684 = vmul.f32 %v652, 2.0
        %v685 = vmul.f32 %v653, 2.0
        %v686 = vmul.f32 %v654, 2.0
        %v687 = vmul.f32 %v655, 2.0
        %v688 = vmul.f32 %v656, 2.0
        %v689 = vmul.f32 %v657, 2.0
        %v690 = vmul.f32 %v674, %v401
        %v691 = vmul.f32 %v675, %v402
        %v692 = vmul.f32 %v676, %v403
        %v693 = vmul.f32 %v677, %v404
        %v694 = vmul.f32 %v678, %v405
        %v695 = vmul.f32 %v679, %v406
        %v696 = vmul.f32 %v680, %v407
        %v697 = vmul.f32 %v681, %v408
        %v698 = vmul.f32 %v682, %v409
        %v699 = vmul.f32 %v683, %v410
        %v700 = vmul.f32 %v684, %v411
        %v701 = vmul.f32 %v685, %v412
        %v702 = vmul.f32 %v686, %v413
        %v703 = vmul.f32 %v687, %v414
        %v704 = vmul.f32 %v688, %v415
        %v705 = vmul.f32 %v689, %v416
        %v706 = vsub.f32 %v658, %v690
        %v707 = vsub.f32 %v659, %v691
        %v708 = vsub.f32 %v660, %v692
        %v709 = vsub.f32 %v661, %v693
        %v710 = vsub.f32 %v662, %v694
        %v711 = vsub.f32 %v663, %v695
        %v712 = vsub.f32 %v664, %v696
        %v713 = vsub.f32 %v665, %v697
        %v714 = vsub.f32 %v666, %v698
        %v715 = vsub.f32 %v667, %v699
        %v716 = vsub.f32 %v668, %v700
        %v717 = vsub.f32 %v669, %v701
        %v718 = vsub.f32 %v670, %v702
        %v719 = vsub.f32 %v671, %v703
        %v720 = vsub.f32 %v672, %v704
        %v721 = vsub.f32 %v673, %v705
        %v722 = vmul.f32 %v401, -0.5
        %v723 = vmul.f32 %v402, -0.5
        %v724 = vmul.f32 %v403, -0.5
        %v725 = vmul.f32 %v404, -0.5
        %v726 = vmul.f32 %v405, -0.5
        %v727 = vmul.f32 %v406, -0.5
        %v728 = vmul.f32 %v407, -0.5
        %v729 = vmul.f32 %v408, -0.5
        %v730 = vmul.f32 %v409, -0.5
        %v731 = vmul.f32 %v410, -0.5
        %v732 = vmul.f32 %v411, -0.5
        %v733 = vmul.f32 %v412, -0.5
        %v734 = vmul.f32 %v413, -0.5
        %v735 = vmul.f32 %v414, -0.5
        %v736 = vmul.f32 %v415, -0.5
        %v737 = vmul.f32 %v416, -0.5
        %v738 = vadd.f32 %v722, 0.75
        %v739 = vadd.f32 %v723, 0.75
        %v740 = vadd.f32 %v724, 0.75
        %v741 = vadd.f32 %v725, 0.75
        %v742 = vadd.f32 %v726, 0.75
        %v743 = vadd.f32 %v727, 0.75
        %v744 = vadd.f32 %v728, 0.75
        %v745 = vadd.f32 %v729, 0.75
        %v746 = vadd.f32 %v730, 0.75
        %v747 = vadd.f32 %v731, 0.75
        %v748 = vadd.f32 %v732, 0.75
        %v749 = vadd.f32 %v733, 0.75
        %v750 = vadd.f32 %v734, 0.75
        %v751 = vadd.f32 %v735, 0.75
        %v752 = vadd.f32 %v736, 0.75
        %v753 = vadd.f32 %v737, 0.75
        %v754 = vmul.f32 %v706, %v706
        %v755 = vmul.f32 %v707, %v707
        %v756 = vmul.f32 %v708, %v708
        %v757 = vmul.f32 %v709, %v709
        %v758 = vmul.f32 %v710, %v710
        %v759 = vmul.f32 %v711, %v711
        %v760 = vmul.f32 %v712, %v712
        %v761 = vmul.f32 %v713, %v713
        %v762 = vmul.f32 %v714, %v714
        %v763 = vmul.f32 %v715, %v715
        %v764 = vmul.f32 %v716, %v716
        %v765 = vmul.f32 %v717, %v717
        %v766 = vmul.f32 %v718, %v718
        %v767 = vmul.f32 %v719, %v719
        %v768 = vmul.f32 %v720, %v720
        %v769 = vmul.f32 %v721, %v721
        %v770 = vmul.f32 %v738, %v754
        %v771 = vmul.f32 %v739, %v755
        %v772 = vmul.f32 %v740, %v756
        %v773 = vmul.f32 %v741, %v757
        %v774 = vmul.f32 %v742, %v758
        %v775 = vmul.f32 %v743, %v759
        %v776 = vmul.f32 %v744, %v760
        %v777 = vmul.f32 %v745, %v761
        %v778 = vmul.f32 %v746, %v762
        %v779 = vmul.f32 %v747, %v763
        %v780 = vmul.f32 %v748, %v764
        %v781 = vmul.f32 %v749, %v765
        %v782 = vmul.f32 %v750, %v766
        %v783 = vmul.f32 %v751, %v767
        %v784 = vmul.f32 %v752, %v768
        %v785 = vmul.f32 %v753, %v769
        %v786 = vld [vmem:[#allocation2] sm:$0x1]
        %787 = vmatprep.subr.mxu0 0.0
        %v788 = vand.u32 %v578, 4294901760
        %789 = vmatpush1.msra.mxu0 %v788
        %790 = vmatprep.subr.mxu0 0.0
        %v791 = vand.u32 %v579, 4294901760
        %792 = vmatpush1.msra.mxu0 %v791
        %793 = vmatprep.subr.mxu0 0.0
        %v794 = vand.u32 %v580, 4294901760
        %795 = vmatpush1.msra.mxu0 %v794
        %796 = vmatprep.subr.mxu0 0.0
        %v797 = vand.u32 %v581, 4294901760
        %798 = vmatpush1.msra.mxu0 %v797
        %799 = vmatprep.subr.mxu0 0.0
        %v800 = vand.u32 %v582, 4294901760
        %801 = vmatpush1.msra.mxu0 %v800
        %802 = vmatprep.subr.mxu0 0.0
        %v803 = vand.u32 %v583, 4294901760
        %804 = vmatpush1.msra.mxu0 %v803
        %805 = vmatprep.subr.mxu0 0.0
        %v806 = vand.u32 %v584, 4294901760
        %807 = vmatpush1.msra.mxu0 %v806
        %808 = vmatprep.subr.mxu0 0.0
        %v809 = vand.u32 %v585, 4294901760
        %810 = vmatpush1.msra.mxu0 %v809
        %811 = vmatprep.subr.mxu0 0.0
        %v812 = vand.u32 %v586, 4294901760
        %813 = vmatpush1.msra.mxu0 %v812
        %814 = vmatprep.subr.mxu0 0.0
        %v815 = vand.u32 %v587, 4294901760
        %816 = vmatpush1.msra.mxu0 %v815
        %817 = vmatprep.subr.mxu0 0.0
        %v818 = vand.u32 %v588, 4294901760
        %819 = vmatpush1.msra.mxu0 %v818
        %820 = vmatprep.subr.mxu0 0.0
        %v821 = vand.u32 %v589, 4294901760
        %822 = vmatpush1.msra.mxu0 %v821
        %823 = vmatprep.subr.mxu0 0.0
        %v824 = vand.u32 %v590, 4294901760
        %825 = vmatpush1.msra.mxu0 %v824
        %826 = vmatprep.subr.mxu0 0.0
        %v827 = vand.u32 %v591, 4294901760
        %828 = vmatpush1.msra.mxu0 %v827
        %829 = vmatprep.subr.mxu0 0.0
        %v830 = vand.u32 %v592, 4294901760
        %831 = vmatpush1.msra.mxu0 %v830
        %832 = vmatprep.subr.mxu0 0.0
        %v833 = vand.u32 %v593, 4294901760
        %834 = vmatpush1.msra.mxu0 %v833
        %835 = vmatprep.subr.mxu0 0.0
        %836 = vmatpush1.msra.mxu0 0.0
        %837 = vmatprep.subr.mxu0 0.0
        %838 = vmatpush1.msra.mxu0 0.0
        %839 = vmatprep.subr.mxu0 0.0
        %840 = vmatpush1.msra.mxu0 0.0
        %841 = vmatprep.subr.mxu0 0.0
        %842 = vmatpush1.msra.mxu0 0.0
        %843 = vmatprep.subr.mxu0 0.0
        %844 = vmatpush1.msra.mxu0 0.0
        %845 = vmatprep.subr.mxu0 0.0
        %846 = vmatpush1.msra.mxu0 0.0
        %847 = vmatprep.subr.mxu0 0.0
        %848 = vmatpush1.msra.mxu0 0.0
        %849 = vmatprep.subr.mxu0 0.0
        %850 = vmatpush1.msra.mxu0 0.0
        %851 = vmatprep.subr.mxu0 0.0
        %852 = vmatpush1.msra.mxu0 0.0
        %853 = vmatprep.subr.mxu0 0.0
        %854 = vmatpush1.msra.mxu0 0.0
        %855 = vmatprep.subr.mxu0 0.0
        %856 = vmatpush1.msra.mxu0 0.0
        %857 = vmatprep.subr.mxu0 0.0
        %858 = vmatpush1.msra.mxu0 0.0
        %859 = vmatprep.subr.mxu0 0.0
        %860 = vmatpush1.msra.mxu0 0.0
        %861 = vmatprep.subr.mxu0 0.0
        %862 = vmatpush1.msra.mxu0 0.0
        %863 = vmatprep.subr.mxu0 0.0
        %864 = vmatpush1.msra.mxu0 0.0
        %865 = vmatprep.subr.mxu0 0.0
        %866 = vmatpush1.msra.mxu0 0.0
        %867 = vmatprep.mubr.f32.mxu0 0.0
        %v868 = vand.u32 %v417, 4294901760
        %v869 = vsub.f32 %v417, %v868
        %v870 = vand.u32 %v869, 4294901760
        %v871 = vsub.f32 %v869, %v870
        %v872 = vand.u32 %v871, 4294901760
        %873 = vmatmul.mubr.f32.gmra.mrb[0].mxu0 %v872
        %v874 = vpop.f32.mrb[0].mxu0
        %v875 = vadd.f32 0.0, %v874
        %v876 = vpop.f32.mrb[0].mxu0
        %877 = vdwg.mxu0
        %878 = vmatprep.subr.mxu0 0.0
        %v879 = vand.u32 %v578, 4294901760
        %v880 = vsub.f32 %v578, %v879
        %v881 = vand.u32 %v880, 4294901760
        %v882 = vsub.f32 %v880, %v881
        %v883 = vand.u32 %v882, 4294901760
        %884 = vmatpush1.msra.mxu0 %v883
        %885 = vmatprep.subr.mxu0 0.0
        %v886 = vand.u32 %v579, 4294901760
        %v887 = vsub.f32 %v579, %v886
        %v888 = vand.u32 %v887, 4294901760
        %v889 = vsub.f32 %v887, %v888
        %v890 = vand.u32 %v889, 4294901760
        %891 = vmatpush1.msra.mxu0 %v890
        %892 = vmatprep.subr.mxu0 0.0
        %v893 = vand.u32 %v580, 4294901760
        %v894 = vsub.f32 %v580, %v893
        %v895 = vand.u32 %v894, 4294901760
        %v896 = vsub.f32 %v894, %v895
        %v897 = vand.u32 %v896, 4294901760
        %898 = vmatpush1.msra.mxu0 %v897
        %899 = vmatprep.subr.mxu0 0.0
        %v900 = vand.u32 %v581, 4294901760
        %v901 = vsub.f32 %v581, %v900
        %v902 = vand.u32 %v901, 4294901760
        %v903 = vsub.f32 %v901, %v902
        %v904 = vand.u32 %v903, 4294901760
        %905 = vmatpush1.msra.mxu0 %v904
        %906 = vmatprep.subr.mxu0 0.0
        %v907 = vand.u32 %v582, 4294901760
        %v908 = vsub.f32 %v582, %v907
        %v909 = vand.u32 %v908, 4294901760
        %v910 = vsub.f32 %v908, %v909
        %v911 = vand.u32 %v910, 4294901760
        %912 = vmatpush1.msra.mxu0 %v911
        %913 = vmatprep.subr.mxu0 0.0
        %v914 = vand.u32 %v583, 4294901760
        %v915 = vsub.f32 %v583, %v914
        %v916 = vand.u32 %v915, 4294901760
        %v917 = vsub.f32 %v915, %v916
        %v918 = vand.u32 %v917, 4294901760
        %919 = vmatpush1.msra.mxu0 %v918
        %920 = vmatprep.subr.mxu0 0.0
        %v921 = vand.u32 %v584, 4294901760
        %v922 = vsub.f32 %v584, %v921
        %v923 = vand.u32 %v922, 4294901760
        %v924 = vsub.f32 %v922, %v923
        %v925 = vand.u32 %v924, 4294901760
        %926 = vmatpush1.msra.mxu0 %v925
        %927 = vmatprep.subr.mxu0 0.0
        %v928 = vand.u32 %v585, 4294901760
        %v929 = vsub.f32 %v585, %v928
        %v930 = vand.u32 %v929, 4294901760
        %v931 = vsub.f32 %v929, %v930
        %v932 = vand.u32 %v931, 4294901760
        %933 = vmatpush1.msra.mxu0 %v932
        %934 = vmatprep.subr.mxu0 0.0
        %v935 = vand.u32 %v586, 4294901760
        %v936 = vsub.f32 %v586, %v935
        %v937 = vand.u32 %v936, 4294901760
        %v938 = vsub.f32 %v936, %v937
        %v939 = vand.u32 %v938, 4294901760
        %940 = vmatpush1.msra.mxu0 %v939
        %941 = vmatprep.subr.mxu0 0.0
        %v942 = vand.u32 %v587, 4294901760
        %v943 = vsub.f32 %v587, %v942
        %v944 = vand.u32 %v943, 4294901760
        %v945 = vsub.f32 %v943, %v944
        %v946 = vand.u32 %v945, 4294901760
        %947 = vmatpush1.msra.mxu0 %v946
        %948 = vmatprep.subr.mxu0 0.0
        %v949 = vand.u32 %v588, 4294901760
        %v950 = vsub.f32 %v588, %v949
        %v951 = vand.u32 %v950, 4294901760
        %v952 = vsub.f32 %v950, %v951
        %v953 = vand.u32 %v952, 4294901760
        %954 = vmatpush1.msra.mxu0 %v953
        %955 = vmatprep.subr.mxu0 0.0
        %v956 = vand.u32 %v589, 4294901760
        %v957 = vsub.f32 %v589, %v956
        %v958 = vand.u32 %v957, 4294901760
        %v959 = vsub.f32 %v957, %v958
        %v960 = vand.u32 %v959, 4294901760
        %961 = vmatpush1.msra.mxu0 %v960
        %962 = vmatprep.subr.mxu0 0.0
        %v963 = vand.u32 %v590, 4294901760
        %v964 = vsub.f32 %v590, %v963
        %v965 = vand.u32 %v964, 4294901760
        %v966 = vsub.f32 %v964, %v965
        %v967 = vand.u32 %v966, 4294901760
        %968 = vmatpush1.msra.mxu0 %v967
        %969 = vmatprep.subr.mxu0 0.0
        %v970 = vand.u32 %v591, 4294901760
        %v971 = vsub.f32 %v591, %v970
        %v972 = vand.u32 %v971, 4294901760
        %v973 = vsub.f32 %v971, %v972
        %v974 = vand.u32 %v973, 4294901760
        %975 = vmatpush1.msra.mxu0 %v974
        %976 = vmatprep.subr.mxu0 0.0
        %v977 = vand.u32 %v592, 4294901760
        %v978 = vsub.f32 %v592, %v977
        %v979 = vand.u32 %v978, 4294901760
        %v980 = vsub.f32 %v978, %v979
        %v981 = vand.u32 %v980, 4294901760
        %982 = vmatpush1.msra.mxu0 %v981
        %983 = vmatprep.subr.mxu0 0.0
        %v984 = vand.u32 %v593, 4294901760
        %v985 = vsub.f32 %v593, %v984
        %v986 = vand.u32 %v985, 4294901760
        %v987 = vsub.f32 %v985, %v986
        %v988 = vand.u32 %v987, 4294901760
        %989 = vmatpush1.msra.mxu0 %v988
        %990 = vmatprep.subr.mxu0 0.0
        %991 = vmatpush1.msra.mxu0 0.0
        %992 = vmatprep.subr.mxu0 0.0
        %993 = vmatpush1.msra.mxu0 0.0
        %994 = vmatprep.subr.mxu0 0.0
        %995 = vmatpush1.msra.mxu0 0.0
        %996 = vmatprep.subr.mxu0 0.0
        %997 = vmatpush1.msra.mxu0 0.0
        %998 = vmatprep.subr.mxu0 0.0
        %999 = vmatpush1.msra.mxu0 0.0
        %1000 = vmatprep.subr.mxu0 0.0
        %1001 = vmatpush1.msra.mxu0 0.0
        %1002 = vmatprep.subr.mxu0 0.0
        %1003 = vmatpush1.msra.mxu0 0.0
        %1004 = vmatprep.subr.mxu0 0.0
        %1005 = vmatpush1.msra.mxu0 0.0
        %1006 = vmatprep.subr.mxu0 0.0
        %1007 = vmatpush1.msra.mxu0 0.0
        %1008 = vmatprep.subr.mxu0 0.0
        %1009 = vmatpush1.msra.mxu0 0.0
        %1010 = vmatprep.subr.mxu0 0.0
        %1011 = vmatpush1.msra.mxu0 0.0
        %1012 = vmatprep.subr.mxu0 0.0
        %1013 = vmatpush1.msra.mxu0 0.0
        %1014 = vmatprep.subr.mxu0 0.0
        %1015 = vmatpush1.msra.mxu0 0.0
        %1016 = vmatprep.subr.mxu0 0.0
        %1017 = vmatpush1.msra.mxu0 0.0
        %1018 = vmatprep.subr.mxu0 0.0
        %1019 = vmatpush1.msra.mxu0 0.0
        %1020 = vmatprep.subr.mxu0 0.0
        %1021 = vmatpush1.msra.mxu0 0.0
        %1022 = vmatprep.mubr.f32.mxu0 0.0
        %v1023 = vand.u32 %v417, 4294901760
        %1024 = vmatmul.mubr.f32.gmra.mrb[0].mxu0 %v1023
        %v1025 = vpop.f32.mrb[0].mxu0
        %v1026 = vadd.f32 %v875, %v1025
        %v1027 = vpop.f32.mrb[0].mxu0
        %1028 = vdwg.mxu0
        %1029 = vmatprep.subr.mxu0 0.0
        %v1030 = vand.u32 %v578, 4294901760
        %v1031 = vsub.f32 %v578, %v1030
        %1032 = vmatpush1.msra.mxu0 %v1031
        %1033 = vmatprep.subr.mxu0 0.0
        %v1034 = vand.u32 %v579, 4294901760
        %v1035 = vsub.f32 %v579, %v1034
        %1036 = vmatpush1.msra.mxu0 %v1035
        %1037 = vmatprep.subr.mxu0 0.0
        %v1038 = vand.u32 %v580, 4294901760
        %v1039 = vsub.f32 %v580, %v1038
        %1040 = vmatpush1.msra.mxu0 %v1039
        %1041 = vmatprep.subr.mxu0 0.0
        %v1042 = vand.u32 %v581, 4294901760
        %v1043 = vsub.f32 %v581, %v1042
        %1044 = vmatpush1.msra.mxu0 %v1043
        %1045 = vmatprep.subr.mxu0 0.0
        %v1046 = vand.u32 %v582, 4294901760
        %v1047 = vsub.f32 %v582, %v1046
        %1048 = vmatpush1.msra.mxu0 %v1047
        %1049 = vmatprep.subr.mxu0 0.0
        %v1050 = vand.u32 %v583, 4294901760
        %v1051 = vsub.f32 %v583, %v1050
        %1052 = vmatpush1.msra.mxu0 %v1051
        %1053 = vmatprep.subr.mxu0 0.0
        %v1054 = vand.u32 %v584, 4294901760
        %v1055 = vsub.f32 %v584, %v1054
        %1056 = vmatpush1.msra.mxu0 %v1055
        %1057 = vmatprep.subr.mxu0 0.0
        %v1058 = vand.u32 %v585, 4294901760
        %v1059 = vsub.f32 %v585, %v1058
        %1060 = vmatpush1.msra.mxu0 %v1059
        %1061 = vmatprep.subr.mxu0 0.0
        %v1062 = vand.u32 %v586, 4294901760
        %v1063 = vsub.f32 %v586, %v1062
        %1064 = vmatpush1.msra.mxu0 %v1063
        %1065 = vmatprep.subr.mxu0 0.0
        %v1066 = vand.u32 %v587, 4294901760
        %v1067 = vsub.f32 %v587, %v1066
        %1068 = vmatpush1.msra.mxu0 %v1067
        %1069 = vmatprep.subr.mxu0 0.0
        %v1070 = vand.u32 %v588, 4294901760
        %v1071 = vsub.f32 %v588, %v1070
        %1072 = vmatpush1.msra.mxu0 %v1071
        %1073 = vmatprep.subr.mxu0 0.0
        %v1074 = vand.u32 %v589, 4294901760
        %v1075 = vsub.f32 %v589, %v1074
        %1076 = vmatpush1.msra.mxu0 %v1075
        %1077 = vmatprep.subr.mxu0 0.0
        %v1078 = vand.u32 %v590, 4294901760
        %v1079 = vsub.f32 %v590, %v1078
        %1080 = vmatpush1.msra.mxu0 %v1079
        %1081 = vmatprep.subr.mxu0 0.0
        %v1082 = vand.u32 %v591, 4294901760
        %v1083 = vsub.f32 %v591, %v1082
        %1084 = vmatpush1.msra.mxu0 %v1083
        %1085 = vmatprep.subr.mxu0 0.0
        %v1086 = vand.u32 %v592, 4294901760
        %v1087 = vsub.f32 %v592, %v1086
        %1088 = vmatpush1.msra.mxu0 %v1087
        %1089 = vmatprep.subr.mxu0 0.0
        %v1090 = vand.u32 %v593, 4294901760
        %v1091 = vsub.f32 %v593, %v1090
        %1092 = vmatpush1.msra.mxu0 %v1091
        %1093 = vmatprep.subr.mxu0 0.0
        %1094 = vmatpush1.msra.mxu0 0.0
        %1095 = vmatprep.subr.mxu0 0.0
        %1096 = vmatpush1.msra.mxu0 0.0
        %1097 = vmatprep.subr.mxu0 0.0
        %1098 = vmatpush1.msra.mxu0 0.0
        %1099 = vmatprep.subr.mxu0 0.0
        %1100 = vmatpush1.msra.mxu0 0.0
        %1101 = vmatprep.subr.mxu0 0.0
        %1102 = vmatpush1.msra.mxu0 0.0
        %1103 = vmatprep.subr.mxu0 0.0
        %1104 = vmatpush1.msra.mxu0 0.0
        %1105 = vmatprep.subr.mxu0 0.0
        %1106 = vmatpush1.msra.mxu0 0.0
        %1107 = vmatprep.subr.mxu0 0.0
        %1108 = vmatpush1.msra.mxu0 0.0
        %1109 = vmatprep.subr.mxu0 0.0
        %1110 = vmatpush1.msra.mxu0 0.0
        %1111 = vmatprep.subr.mxu0 0.0
        %1112 = vmatpush1.msra.mxu0 0.0
        %1113 = vmatprep.subr.mxu0 0.0
        %1114 = vmatpush1.msra.mxu0 0.0
        %1115 = vmatprep.subr.mxu0 0.0
        %1116 = vmatpush1.msra.mxu0 0.0
        %1117 = vmatprep.subr.mxu0 0.0
        %1118 = vmatpush1.msra.mxu0 0.0
        %1119 = vmatprep.subr.mxu0 0.0
        %1120 = vmatpush1.msra.mxu0 0.0
        %1121 = vmatprep.subr.mxu0 0.0
        %1122 = vmatpush1.msra.mxu0 0.0
        %1123 = vmatprep.subr.mxu0 0.0
        %1124 = vmatpush1.msra.mxu0 0.0
        %1125 = vmatprep.mubr.f32.mxu0 0.0
        %v1126 = vand.u32 %v417, 4294901760
        %v1127 = vsub.f32 %v417, %v1126
        %1128 = vmatmul.mubr.f32.gmra.mrb[0].mxu0 %v1127
        %v1129 = vpop.f32.mrb[0].mxu0
        %v1130 = vadd.f32 %v1026, %v1129
        %v1131 = vpop.f32.mrb[0].mxu0
        %1132 = vdwg.mxu0
        %1133 = vmatprep.subr.mxu0 0.0
        %v1134 = vand.u32 %v578, 4294901760
        %1135 = vmatpush1.msra.mxu0 %v1134
        %1136 = vmatprep.subr.mxu0 0.0
        %v1137 = vand.u32 %v579, 4294901760
        %1138 = vmatpush1.msra.mxu0 %v1137
        %1139 = vmatprep.subr.mxu0 0.0
        %v1140 = vand.u32 %v580, 4294901760
        %1141 = vmatpush1.msra.mxu0 %v1140
        %1142 = vmatprep.subr.mxu0 0.0
        %v1143 = vand.u32 %v581, 4294901760
        %1144 = vmatpush1.msra.mxu0 %v1143
        %1145 = vmatprep.subr.mxu0 0.0
        %v1146 = vand.u32 %v582, 4294901760
        %1147 = vmatpush1.msra.mxu0 %v1146
        %1148 = vmatprep.subr.mxu0 0.0
        %v1149 = vand.u32 %v583, 4294901760
        %1150 = vmatpush1.msra.mxu0 %v1149
        %1151 = vmatprep.subr.mxu0 0.0
        %v1152 = vand.u32 %v584, 4294901760
        %1153 = vmatpush1.msra.mxu0 %v1152
        %1154 = vmatprep.subr.mxu0 0.0
        %v1155 = vand.u32 %v585, 4294901760
        %1156 = vmatpush1.msra.mxu0 %v1155
        %1157 = vmatprep.subr.mxu0 0.0
        %v1158 = vand.u32 %v586, 4294901760
        %1159 = vmatpush1.msra.mxu0 %v1158
        %1160 = vmatprep.subr.mxu0 0.0
        %v1161 = vand.u32 %v587, 4294901760
        %1162 = vmatpush1.msra.mxu0 %v1161
        %1163 = vmatprep.subr.mxu0 0.0
        %v1164 = vand.u32 %v588, 4294901760
        %1165 = vmatpush1.msra.mxu0 %v1164
        %1166 = vmatprep.subr.mxu0 0.0
        %v1167 = vand.u32 %v589, 4294901760
        %1168 = vmatpush1.msra.mxu0 %v1167
        %1169 = vmatprep.subr.mxu0 0.0
        %v1170 = vand.u32 %v590, 4294901760
        %1171 = vmatpush1.msra.mxu0 %v1170
        %1172 = vmatprep.subr.mxu0 0.0
        %v1173 = vand.u32 %v591, 4294901760
        %1174 = vmatpush1.msra.mxu0 %v1173
        %1175 = vmatprep.subr.mxu0 0.0
        %v1176 = vand.u32 %v592, 4294901760
        %1177 = vmatpush1.msra.mxu0 %v1176
        %1178 = vmatprep.subr.mxu0 0.0
        %v1179 = vand.u32 %v593, 4294901760
        %1180 = vmatpush1.msra.mxu0 %v1179
        %1181 = vmatprep.subr.mxu0 0.0
        %1182 = vmatpush1.msra.mxu0 0.0
        %1183 = vmatprep.subr.mxu0 0.0
        %1184 = vmatpush1.msra.mxu0 0.0
        %1185 = vmatprep.subr.mxu0 0.0
        %1186 = vmatpush1.msra.mxu0 0.0
        %1187 = vmatprep.subr.mxu0 0.0
        %1188 = vmatpush1.msra.mxu0 0.0
        %1189 = vmatprep.subr.mxu0 0.0
        %1190 = vmatpush1.msra.mxu0 0.0
        %1191 = vmatprep.subr.mxu0 0.0
        %1192 = vmatpush1.msra.mxu0 0.0
        %1193 = vmatprep.subr.mxu0 0.0
        %1194 = vmatpush1.msra.mxu0 0.0
        %1195 = vmatprep.subr.mxu0 0.0
        %1196 = vmatpush1.msra.mxu0 0.0
        %1197 = vmatprep.subr.mxu0 0.0
        %1198 = vmatpush1.msra.mxu0 0.0
        %1199 = vmatprep.subr.mxu0 0.0
        %1200 = vmatpush1.msra.mxu0 0.0
        %1201 = vmatprep.subr.mxu0 0.0
        %1202 = vmatpush1.msra.mxu0 0.0
        %1203 = vmatprep.subr.mxu0 0.0
        %1204 = vmatpush1.msra.mxu0 0.0
        %1205 = vmatprep.subr.mxu0 0.0
        %1206 = vmatpush1.msra.mxu0 0.0
        %1207 = vmatprep.subr.mxu0 0.0
        %1208 = vmatpush1.msra.mxu0 0.0
        %1209 = vmatprep.subr.mxu0 0.0
        %1210 = vmatpush1.msra.mxu0 0.0
        %1211 = vmatprep.subr.mxu0 0.0
        %1212 = vmatpush1.msra.mxu0 0.0
        %1213 = vmatprep.mubr.f32.mxu0 0.0
        %v1214 = vand.u32 %v417, 4294901760
        %v1215 = vsub.f32 %v417, %v1214
        %v1216 = vand.u32 %v1215, 4294901760
        %1217 = vmatmul.mubr.f32.gmra.mrb[0].mxu0 %v1216
        %v1218 = vpop.f32.mrb[0].mxu0
        %v1219 = vadd.f32 %v1130, %v1218
        %v1220 = vpop.f32.mrb[0].mxu0
        %1221 = vdwg.mxu0
        %1222 = vmatprep.subr.mxu0 0.0
        %v1223 = vand.u32 %v578, 4294901760
        %v1224 = vsub.f32 %v578, %v1223
        %v1225 = vand.u32 %v1224, 4294901760
        %1226 = vmatpush1.msra.mxu0 %v1225
        %1227 = vmatprep.subr.mxu0 0.0
        %v1228 = vand.u32 %v579, 4294901760
        %v1229 = vsub.f32 %v579, %v1228
        %v1230 = vand.u32 %v1229, 4294901760
        %1231 = vmatpush1.msra.mxu0 %v1230
        %1232 = vmatprep.subr.mxu0 0.0
        %v1233 = vand.u32 %v580, 4294901760
        %v1234 = vsub.f32 %v580, %v1233
        %v1235 = vand.u32 %v1234, 4294901760
        %1236 = vmatpush1.msra.mxu0 %v1235
        %1237 = vmatprep.subr.mxu0 0.0
        %v1238 = vand.u32 %v581, 4294901760
        %v1239 = vsub.f32 %v581, %v1238
        %v1240 = vand.u32 %v1239, 4294901760
        %1241 = vmatpush1.msra.mxu0 %v1240
        %1242 = vmatprep.subr.mxu0 0.0
        %v1243 = vand.u32 %v582, 4294901760
        %v1244 = vsub.f32 %v582, %v1243
        %v1245 = vand.u32 %v1244, 4294901760
        %1246 = vmatpush1.msra.mxu0 %v1245
        %1247 = vmatprep.subr.mxu0 0.0
        %v1248 = vand.u32 %v583, 4294901760
        %v1249 = vsub.f32 %v583, %v1248
        %v1250 = vand.u32 %v1249, 4294901760
        %1251 = vmatpush1.msra.mxu0 %v1250
        %1252 = vmatprep.subr.mxu0 0.0
        %v1253 = vand.u32 %v584, 4294901760
        %v1254 = vsub.f32 %v584, %v1253
        %v1255 = vand.u32 %v1254, 4294901760
        %1256 = vmatpush1.msra.mxu0 %v1255
        %1257 = vmatprep.subr.mxu0 0.0
        %v1258 = vand.u32 %v585, 4294901760
        %v1259 = vsub.f32 %v585, %v1258
        %v1260 = vand.u32 %v1259, 4294901760
        %1261 = vmatpush1.msra.mxu0 %v1260
        %1262 = vmatprep.subr.mxu0 0.0
        %v1263 = vand.u32 %v586, 4294901760
        %v1264 = vsub.f32 %v586, %v1263
        %v1265 = vand.u32 %v1264, 4294901760
        %1266 = vmatpush1.msra.mxu0 %v1265
        %1267 = vmatprep.subr.mxu0 0.0
        %v1268 = vand.u32 %v587, 4294901760
        %v1269 = vsub.f32 %v587, %v1268
        %v1270 = vand.u32 %v1269, 4294901760
        %1271 = vmatpush1.msra.mxu0 %v1270
        %1272 = vmatprep.subr.mxu0 0.0
        %v1273 = vand.u32 %v588, 4294901760
        %v1274 = vsub.f32 %v588, %v1273
        %v1275 = vand.u32 %v1274, 4294901760
        %1276 = vmatpush1.msra.mxu0 %v1275
        %1277 = vmatprep.subr.mxu0 0.0
        %v1278 = vand.u32 %v589, 4294901760
        %v1279 = vsub.f32 %v589, %v1278
        %v1280 = vand.u32 %v1279, 4294901760
        %1281 = vmatpush1.msra.mxu0 %v1280
        %1282 = vmatprep.subr.mxu0 0.0
        %v1283 = vand.u32 %v590, 4294901760
        %v1284 = vsub.f32 %v590, %v1283
        %v1285 = vand.u32 %v1284, 4294901760
        %1286 = vmatpush1.msra.mxu0 %v1285
        %1287 = vmatprep.subr.mxu0 0.0
        %v1288 = vand.u32 %v591, 4294901760
        %v1289 = vsub.f32 %v591, %v1288
        %v1290 = vand.u32 %v1289, 4294901760
        %1291 = vmatpush1.msra.mxu0 %v1290
        %1292 = vmatprep.subr.mxu0 0.0
        %v1293 = vand.u32 %v592, 4294901760
        %v1294 = vsub.f32 %v592, %v1293
        %v1295 = vand.u32 %v1294, 4294901760
        %1296 = vmatpush1.msra.mxu0 %v1295
        %1297 = vmatprep.subr.mxu0 0.0
        %v1298 = vand.u32 %v593, 4294901760
        %v1299 = vsub.f32 %v593, %v1298
        %v1300 = vand.u32 %v1299, 4294901760
        %1301 = vmatpush1.msra.mxu0 %v1300
        %1302 = vmatprep.subr.mxu0 0.0
        %1303 = vmatpush1.msra.mxu0 0.0
        %1304 = vmatprep.subr.mxu0 0.0
        %1305 = vmatpush1.msra.mxu0 0.0
        %1306 = vmatprep.subr.mxu0 0.0
        %1307 = vmatpush1.msra.mxu0 0.0
        %1308 = vmatprep.subr.mxu0 0.0
        %1309 = vmatpush1.msra.mxu0 0.0
        %1310 = vmatprep.subr.mxu0 0.0
        %1311 = vmatpush1.msra.mxu0 0.0
        %1312 = vmatprep.subr.mxu0 0.0
        %1313 = vmatpush1.msra.mxu0 0.0
        %1314 = vmatprep.subr.mxu0 0.0
        %1315 = vmatpush1.msra.mxu0 0.0
        %1316 = vmatprep.subr.mxu0 0.0
        %1317 = vmatpush1.msra.mxu0 0.0
        %1318 = vmatprep.subr.mxu0 0.0
        %1319 = vmatpush1.msra.mxu0 0.0
        %1320 = vmatprep.subr.mxu0 0.0
        %1321 = vmatpush1.msra.mxu0 0.0
        %1322 = vmatprep.subr.mxu0 0.0
        %1323 = vmatpush1.msra.mxu0 0.0
        %1324 = vmatprep.subr.mxu0 0.0
        %1325 = vmatpush1.msra.mxu0 0.0
        %1326 = vmatprep.subr.mxu0 0.0
        %1327 = vmatpush1.msra.mxu0 0.0
        %1328 = vmatprep.subr.mxu0 0.0
        %1329 = vmatpush1.msra.mxu0 0.0
        %1330 = vmatprep.subr.mxu0 0.0
        %1331 = vmatpush1.msra.mxu0 0.0
        %1332 = vmatprep.subr.mxu0 0.0
        %1333 = vmatpush1.msra.mxu0 0.0
        %1334 = vmatprep.mubr.f32.mxu0 0.0
        %v1335 = vand.u32 %v417, 4294901760
        %1336 = vmatmul.mubr.f32.gmra.mrb[0].mxu0 %v1335
        %v1337 = vpop.f32.mrb[0].mxu0
        %v1338 = vadd.f32 %v1219, %v1337
        %v1339 = vpop.f32.mrb[0].mxu0
        %1340 = vdwg.mxu0
        %1341 = vmatprep.subr.mxu0 0.0
        %v1342 = vand.u32 %v578, 4294901760
        %1343 = vmatpush1.msra.mxu0 %v1342
        %1344 = vmatprep.subr.mxu0 0.0
        %v1345 = vand.u32 %v579, 4294901760
        %1346 = vmatpush1.msra.mxu0 %v1345
        %1347 = vmatprep.subr.mxu0 0.0
        %v1348 = vand.u32 %v580, 4294901760
        %1349 = vmatpush1.msra.mxu0 %v1348
        %1350 = vmatprep.subr.mxu0 0.0
        %v1351 = vand.u32 %v581, 4294901760
        %1352 = vmatpush1.msra.mxu0 %v1351
        %1353 = vmatprep.subr.mxu0 0.0
        %v1354 = vand.u32 %v582, 4294901760
        %1355 = vmatpush1.msra.mxu0 %v1354
        %1356 = vmatprep.subr.mxu0 0.0
        %v1357 = vand.u32 %v583, 4294901760
        %1358 = vmatpush1.msra.mxu0 %v1357
        %1359 = vmatprep.subr.mxu0 0.0
        %v1360 = vand.u32 %v584, 4294901760
        %1361 = vmatpush1.msra.mxu0 %v1360
        %1362 = vmatprep.subr.mxu0 0.0
        %v1363 = vand.u32 %v585, 4294901760
        %1364 = vmatpush1.msra.mxu0 %v1363
        %1365 = vmatprep.subr.mxu0 0.0
        %v1366 = vand.u32 %v586, 4294901760
        %1367 = vmatpush1.msra.mxu0 %v1366
        %1368 = vmatprep.subr.mxu0 0.0
        %v1369 = vand.u32 %v587, 4294901760
        %1370 = vmatpush1.msra.mxu0 %v1369
        %1371 = vmatprep.subr.mxu0 0.0
        %v1372 = vand.u32 %v588, 4294901760
        %1373 = vmatpush1.msra.mxu0 %v1372
        %1374 = vmatprep.subr.mxu0 0.0
        %v1375 = vand.u32 %v589, 4294901760
        %1376 = vmatpush1.msra.mxu0 %v1375
        %1377 = vmatprep.subr.mxu0 0.0
        %v1378 = vand.u32 %v590, 4294901760
        %1379 = vmatpush1.msra.mxu0 %v1378
        %1380 = vmatprep.subr.mxu0 0.0
        %v1381 = vand.u32 %v591, 4294901760
        %1382 = vmatpush1.msra.mxu0 %v1381
        %1383 = vmatprep.subr.mxu0 0.0
        %v1384 = vand.u32 %v592, 4294901760
        %1385 = vmatpush1.msra.mxu0 %v1384
        %1386 = vmatprep.subr.mxu0 0.0
        %v1387 = vand.u32 %v593, 4294901760
        %1388 = vmatpush1.msra.mxu0 %v1387
        %1389 = vmatprep.subr.mxu0 0.0
        %1390 = vmatpush1.msra.mxu0 0.0
        %1391 = vmatprep.subr.mxu0 0.0
        %1392 = vmatpush1.msra.mxu0 0.0
        %1393 = vmatprep.subr.mxu0 0.0
        %1394 = vmatpush1.msra.mxu0 0.0
        %1395 = vmatprep.subr.mxu0 0.0
        %1396 = vmatpush1.msra.mxu0 0.0
        %1397 = vmatprep.subr.mxu0 0.0
        %1398 = vmatpush1.msra.mxu0 0.0
        %1399 = vmatprep.subr.mxu0 0.0
        %1400 = vmatpush1.msra.mxu0 0.0
        %1401 = vmatprep.subr.mxu0 0.0
        %1402 = vmatpush1.msra.mxu0 0.0
        %1403 = vmatprep.subr.mxu0 0.0
        %1404 = vmatpush1.msra.mxu0 0.0
        %1405 = vmatprep.subr.mxu0 0.0
        %1406 = vmatpush1.msra.mxu0 0.0
        %1407 = vmatprep.subr.mxu0 0.0
        %1408 = vmatpush1.msra.mxu0 0.0
        %1409 = vmatprep.subr.mxu0 0.0
        %1410 = vmatpush1.msra.mxu0 0.0
        %1411 = vmatprep.subr.mxu0 0.0
        %1412 = vmatpush1.msra.mxu0 0.0
        %1413 = vmatprep.subr.mxu0 0.0
        %1414 = vmatpush1.msra.mxu0 0.0
        %1415 = vmatprep.subr.mxu0 0.0
        %1416 = vmatpush1.msra.mxu0 0.0
        %1417 = vmatprep.subr.mxu0 0.0
        %1418 = vmatpush1.msra.mxu0 0.0
        %1419 = vmatprep.subr.mxu0 0.0
        %1420 = vmatpush1.msra.mxu0 0.0
        %1421 = vmatprep.mubr.f32.mxu0 0.0
        %v1422 = vand.u32 %v417, 4294901760
        %1423 = vmatmul.mubr.f32.gmra.mrb[0].mxu0 %v1422
        %v1424 = vpop.f32.mrb[0].mxu0
        %v1425 = vadd.f32 %v1338, %v1424
        %v1426 = vpop.f32.mrb[0].mxu0
        %1427 = vdwg.mxu0
        %v1428 = vadd.f32 %v786, %v1425
        %vm1429 = vcmask 647168
        %1430 = vst.msk [vmem:[#allocation2] sm:$0x1] %vm1429, %v1428
        %v1431 = vld [vmem:[#allocation3] sm:$0x1]
        %1432 = vmatprep.subr.mxu0 0.0
        %v1433 = vand.u32 %v770, 4294901760
        %1434 = vmatpush1.msra.mxu0 %v1433
        %1435 = vmatprep.subr.mxu0 0.0
        %v1436 = vand.u32 %v771, 4294901760
        %1437 = vmatpush1.msra.mxu0 %v1436
        %1438 = vmatprep.subr.mxu0 0.0
        %v1439 = vand.u32 %v772, 4294901760
        %1440 = vmatpush1.msra.mxu0 %v1439
        %1441 = vmatprep.subr.mxu0 0.0
        %v1442 = vand.u32 %v773, 4294901760
        %1443 = vmatpush1.msra.mxu0 %v1442
        %1444 = vmatprep.subr.mxu0 0.0
        %v1445 = vand.u32 %v774, 4294901760
        %1446 = vmatpush1.msra.mxu0 %v1445
        %1447 = vmatprep.subr.mxu0 0.0
        %v1448 = vand.u32 %v775, 4294901760
        %1449 = vmatpush1.msra.mxu0 %v1448
        %1450 = vmatprep.subr.mxu0 0.0
        %v1451 = vand.u32 %v776, 4294901760
        %1452 = vmatpush1.msra.mxu0 %v1451
        %1453 = vmatprep.subr.mxu0 0.0
        %v1454 = vand.u32 %v777, 4294901760
        %1455 = vmatpush1.msra.mxu0 %v1454
        %1456 = vmatprep.subr.mxu0 0.0
        %v1457 = vand.u32 %v778, 4294901760
        %1458 = vmatpush1.msra.mxu0 %v1457
        %1459 = vmatprep.subr.mxu0 0.0
        %v1460 = vand.u32 %v779, 4294901760
        %1461 = vmatpush1.msra.mxu0 %v1460
        %1462 = vmatprep.subr.mxu0 0.0
        %v1463 = vand.u32 %v780, 4294901760
        %1464 = vmatpush1.msra.mxu0 %v1463
        %1465 = vmatprep.subr.mxu0 0.0
        %v1466 = vand.u32 %v781, 4294901760
        %1467 = vmatpush1.msra.mxu0 %v1466
        %1468 = vmatprep.subr.mxu0 0.0
        %v1469 = vand.u32 %v782, 4294901760
        %1470 = vmatpush1.msra.mxu0 %v1469
        %1471 = vmatprep.subr.mxu0 0.0
        %v1472 = vand.u32 %v783, 4294901760
        %1473 = vmatpush1.msra.mxu0 %v1472
        %1474 = vmatprep.subr.mxu0 0.0
        %v1475 = vand.u32 %v784, 4294901760
        %1476 = vmatpush1.msra.mxu0 %v1475
        %1477 = vmatprep.subr.mxu0 0.0
        %v1478 = vand.u32 %v785, 4294901760
        %1479 = vmatpush1.msra.mxu0 %v1478
        %1480 = vmatprep.subr.mxu0 0.0
        %1481 = vmatpush1.msra.mxu0 0.0
        %1482 = vmatprep.subr.mxu0 0.0
        %1483 = vmatpush1.msra.mxu0 0.0
        %1484 = vmatprep.subr.mxu0 0.0
        %1485 = vmatpush1.msra.mxu0 0.0
        %1486 = vmatprep.subr.mxu0 0.0
        %1487 = vmatpush1.msra.mxu0 0.0
        %1488 = vmatprep.subr.mxu0 0.0
        %1489 = vmatpush1.msra.mxu0 0.0
        %1490 = vmatprep.subr.mxu0 0.0
        %1491 = vmatpush1.msra.mxu0 0.0
        %1492 = vmatprep.subr.mxu0 0.0
        %1493 = vmatpush1.msra.mxu0 0.0
        %1494 = vmatprep.subr.mxu0 0.0
        %1495 = vmatpush1.msra.mxu0 0.0
        %1496 = vmatprep.subr.mxu0 0.0
        %1497 = vmatpush1.msra.mxu0 0.0
        %1498 = vmatprep.subr.mxu0 0.0
        %1499 = vmatpush1.msra.mxu0 0.0
        %1500 = vmatprep.subr.mxu0 0.0
        %1501 = vmatpush1.msra.mxu0 0.0
        %1502 = vmatprep.subr.mxu0 0.0
        %1503 = vmatpush1.msra.mxu0 0.0
        %1504 = vmatprep.subr.mxu0 0.0
        %1505 = vmatpush1.msra.mxu0 0.0
        %1506 = vmatprep.subr.mxu0 0.0
        %1507 = vmatpush1.msra.mxu0 0.0
        %1508 = vmatprep.subr.mxu0 0.0
        %1509 = vmatpush1.msra.mxu0 0.0
        %1510 = vmatprep.subr.mxu0 0.0
        %1511 = vmatpush1.msra.mxu0 0.0
        %1512 = vmatprep.mubr.f32.mxu0 0.0
        %v1513 = vand.u32 %v352, 4294901760
        %v1514 = vsub.f32 %v352, %v1513
        %v1515 = vand.u32 %v1514, 4294901760
        %v1516 = vsub.f32 %v1514, %v1515
        %v1517 = vand.u32 %v1516, 4294901760
        %1518 = vmatmul.mubr.f32.gmra.mrb[0].mxu0 %v1517
        %v1519 = vpop.f32.mrb[0].mxu0
        %v1520 = vadd.f32 0.0, %v1519
        %v1521 = vpop.f32.mrb[0].mxu0
        %1522 = vdwg.mxu0
        %1523 = vmatprep.subr.mxu0 0.0
        %v1524 = vand.u32 %v770, 4294901760
        %v1525 = vsub.f32 %v770, %v1524
        %v1526 = vand.u32 %v1525, 4294901760
        %v1527 = vsub.f32 %v1525, %v1526
        %v1528 = vand.u32 %v1527, 4294901760
        %1529 = vmatpush1.msra.mxu0 %v1528
        %1530 = vmatprep.subr.mxu0 0.0
        %v1531 = vand.u32 %v771, 4294901760
        %v1532 = vsub.f32 %v771, %v1531
        %v1533 = vand.u32 %v1532, 4294901760
        %v1534 = vsub.f32 %v1532, %v1533
        %v1535 = vand.u32 %v1534, 4294901760
        %1536 = vmatpush1.msra.mxu0 %v1535
        %1537 = vmatprep.subr.mxu0 0.0
        %v1538 = vand.u32 %v772, 4294901760
        %v1539 = vsub.f32 %v772, %v1538
        %v1540 = vand.u32 %v1539, 4294901760
        %v1541 = vsub.f32 %v1539, %v1540
        %v1542 = vand.u32 %v1541, 4294901760
        %1543 = vmatpush1.msra.mxu0 %v1542
        %1544 = vmatprep.subr.mxu0 0.0
        %v1545 = vand.u32 %v773, 4294901760
        %v1546 = vsub.f32 %v773, %v1545
        %v1547 = vand.u32 %v1546, 4294901760
        %v1548 = vsub.f32 %v1546, %v1547
        %v1549 = vand.u32 %v1548, 4294901760
        %1550 = vmatpush1.msra.mxu0 %v1549
        %1551 = vmatprep.subr.mxu0 0.0
        %v1552 = vand.u32 %v774, 4294901760
        %v1553 = vsub.f32 %v774, %v1552
        %v1554 = vand.u32 %v1553, 4294901760
        %v1555 = vsub.f32 %v1553, %v1554
        %v1556 = vand.u32 %v1555, 4294901760
        %1557 = vmatpush1.msra.mxu0 %v1556
        %1558 = vmatprep.subr.mxu0 0.0
        %v1559 = vand.u32 %v775, 4294901760
        %v1560 = vsub.f32 %v775, %v1559
        %v1561 = vand.u32 %v1560, 4294901760
        %v1562 = vsub.f32 %v1560, %v1561
        %v1563 = vand.u32 %v1562, 4294901760
        %1564 = vmatpush1.msra.mxu0 %v1563
        %1565 = vmatprep.subr.mxu0 0.0
        %v1566 = vand.u32 %v776, 4294901760
        %v1567 = vsub.f32 %v776, %v1566
        %v1568 = vand.u32 %v1567, 4294901760
        %v1569 = vsub.f32 %v1567, %v1568
        %v1570 = vand.u32 %v1569, 4294901760
        %1571 = vmatpush1.msra.mxu0 %v1570
        %1572 = vmatprep.subr.mxu0 0.0
        %v1573 = vand.u32 %v777, 4294901760
        %v1574 = vsub.f32 %v777, %v1573
        %v1575 = vand.u32 %v1574, 4294901760
        %v1576 = vsub.f32 %v1574, %v1575
        %v1577 = vand.u32 %v1576, 4294901760
        %1578 = vmatpush1.msra.mxu0 %v1577
        %1579 = vmatprep.subr.mxu0 0.0
        %v1580 = vand.u32 %v778, 4294901760
        %v1581 = vsub.f32 %v778, %v1580
        %v1582 = vand.u32 %v1581, 4294901760
        %v1583 = vsub.f32 %v1581, %v1582
        %v1584 = vand.u32 %v1583, 4294901760
        %1585 = vmatpush1.msra.mxu0 %v1584
        %1586 = vmatprep.subr.mxu0 0.0
        %v1587 = vand.u32 %v779, 4294901760
        %v1588 = vsub.f32 %v779, %v1587
        %v1589 = vand.u32 %v1588, 4294901760
        %v1590 = vsub.f32 %v1588, %v1589
        %v1591 = vand.u32 %v1590, 4294901760
        %1592 = vmatpush1.msra.mxu0 %v1591
        %1593 = vmatprep.subr.mxu0 0.0
        %v1594 = vand.u32 %v780, 4294901760
        %v1595 = vsub.f32 %v780, %v1594
        %v1596 = vand.u32 %v1595, 4294901760
        %v1597 = vsub.f32 %v1595, %v1596
        %v1598 = vand.u32 %v1597, 4294901760
        %1599 = vmatpush1.msra.mxu0 %v1598
        %1600 = vmatprep.subr.mxu0 0.0
        %v1601 = vand.u32 %v781, 4294901760
        %v1602 = vsub.f32 %v781, %v1601
        %v1603 = vand.u32 %v1602, 4294901760
        %v1604 = vsub.f32 %v1602, %v1603
        %v1605 = vand.u32 %v1604, 4294901760
        %1606 = vmatpush1.msra.mxu0 %v1605
        %1607 = vmatprep.subr.mxu0 0.0
        %v1608 = vand.u32 %v782, 4294901760
        %v1609 = vsub.f32 %v782, %v1608
        %v1610 = vand.u32 %v1609, 4294901760
        %v1611 = vsub.f32 %v1609, %v1610
        %v1612 = vand.u32 %v1611, 4294901760
        %1613 = vmatpush1.msra.mxu0 %v1612
        %1614 = vmatprep.subr.mxu0 0.0
        %v1615 = vand.u32 %v783, 4294901760
        %v1616 = vsub.f32 %v783, %v1615
        %v1617 = vand.u32 %v1616, 4294901760
        %v1618 = vsub.f32 %v1616, %v1617
        %v1619 = vand.u32 %v1618, 4294901760
        %1620 = vmatpush1.msra.mxu0 %v1619
        %1621 = vmatprep.subr.mxu0 0.0
        %v1622 = vand.u32 %v784, 4294901760
        %v1623 = vsub.f32 %v784, %v1622
        %v1624 = vand.u32 %v1623, 4294901760
        %v1625 = vsub.f32 %v1623, %v1624
        %v1626 = vand.u32 %v1625, 4294901760
        %1627 = vmatpush1.msra.mxu0 %v1626
        %1628 = vmatprep.subr.mxu0 0.0
        %v1629 = vand.u32 %v785, 4294901760
        %v1630 = vsub.f32 %v785, %v1629
        %v1631 = vand.u32 %v1630, 4294901760
        %v1632 = vsub.f32 %v1630, %v1631
        %v1633 = vand.u32 %v1632, 4294901760
        %1634 = vmatpush1.msra.mxu0 %v1633
        %1635 = vmatprep.subr.mxu0 0.0
        %1636 = vmatpush1.msra.mxu0 0.0
        %1637 = vmatprep.subr.mxu0 0.0
        %1638 = vmatpush1.msra.mxu0 0.0
        %1639 = vmatprep.subr.mxu0 0.0
        %1640 = vmatpush1.msra.mxu0 0.0
        %1641 = vmatprep.subr.mxu0 0.0
        %1642 = vmatpush1.msra.mxu0 0.0
        %1643 = vmatprep.subr.mxu0 0.0
        %1644 = vmatpush1.msra.mxu0 0.0
        %1645 = vmatprep.subr.mxu0 0.0
        %1646 = vmatpush1.msra.mxu0 0.0
        %1647 = vmatprep.subr.mxu0 0.0
        %1648 = vmatpush1.msra.mxu0 0.0
        %1649 = vmatprep.subr.mxu0 0.0
        %1650 = vmatpush1.msra.mxu0 0.0
        %1651 = vmatprep.subr.mxu0 0.0
        %1652 = vmatpush1.msra.mxu0 0.0
        %1653 = vmatprep.subr.mxu0 0.0
        %1654 = vmatpush1.msra.mxu0 0.0
        %1655 = vmatprep.subr.mxu0 0.0
        %1656 = vmatpush1.msra.mxu0 0.0
        %1657 = vmatprep.subr.mxu0 0.0
        %1658 = vmatpush1.msra.mxu0 0.0
        %1659 = vmatprep.subr.mxu0 0.0
        %1660 = vmatpush1.msra.mxu0 0.0
        %1661 = vmatprep.subr.mxu0 0.0
        %1662 = vmatpush1.msra.mxu0 0.0
        %1663 = vmatprep.subr.mxu0 0.0
        %1664 = vmatpush1.msra.mxu0 0.0
        %1665 = vmatprep.subr.mxu0 0.0
        %1666 = vmatpush1.msra.mxu0 0.0
        %1667 = vmatprep.mubr.f32.mxu0 0.0
        %v1668 = vand.u32 %v352, 4294901760
        %1669 = vmatmul.mubr.f32.gmra.mrb[0].mxu0 %v1668
        %v1670 = vpop.f32.mrb[0].mxu0
        %v1671 = vadd.f32 %v1520, %v1670
        %v1672 = vpop.f32.mrb[0].mxu0
        %1673 = vdwg.mxu0
        %1674 = vmatprep.subr.mxu0 0.0
        %v1675 = vand.u32 %v770, 4294901760
        %v1676 = vsub.f32 %v770, %v1675
        %1677 = vmatpush1.msra.mxu0 %v1676
        %1678 = vmatprep.subr.mxu0 0.0
        %v1679 = vand.u32 %v771, 4294901760
        %v1680 = vsub.f32 %v771, %v1679
        %1681 = vmatpush1.msra.mxu0 %v1680
        %1682 = vmatprep.subr.mxu0 0.0
        %v1683 = vand.u32 %v772, 4294901760
        %v1684 = vsub.f32 %v772, %v1683
        %1685 = vmatpush1.msra.mxu0 %v1684
        %1686 = vmatprep.subr.mxu0 0.0
        %v1687 = vand.u32 %v773, 4294901760
        %v1688 = vsub.f32 %v773, %v1687
        %1689 = vmatpush1.msra.mxu0 %v1688
        %1690 = vmatprep.subr.mxu0 0.0
        %v1691 = vand.u32 %v774, 4294901760
        %v1692 = vsub.f32 %v774, %v1691
        %1693 = vmatpush1.msra.mxu0 %v1692
        %1694 = vmatprep.subr.mxu0 0.0
        %v1695 = vand.u32 %v775, 4294901760
        %v1696 = vsub.f32 %v775, %v1695
        %1697 = vmatpush1.msra.mxu0 %v1696
        %1698 = vmatprep.subr.mxu0 0.0
        %v1699 = vand.u32 %v776, 4294901760
        %v1700 = vsub.f32 %v776, %v1699
        %1701 = vmatpush1.msra.mxu0 %v1700
        %1702 = vmatprep.subr.mxu0 0.0
        %v1703 = vand.u32 %v777, 4294901760
        %v1704 = vsub.f32 %v777, %v1703
        %1705 = vmatpush1.msra.mxu0 %v1704
        %1706 = vmatprep.subr.mxu0 0.0
        %v1707 = vand.u32 %v778, 4294901760
        %v1708 = vsub.f32 %v778, %v1707
        %1709 = vmatpush1.msra.mxu0 %v1708
        %1710 = vmatprep.subr.mxu0 0.0
        %v1711 = vand.u32 %v779, 4294901760
        %v1712 = vsub.f32 %v779, %v1711
        %1713 = vmatpush1.msra.mxu0 %v1712
        %1714 = vmatprep.subr.mxu0 0.0
        %v1715 = vand.u32 %v780, 4294901760
        %v1716 = vsub.f32 %v780, %v1715
        %1717 = vmatpush1.msra.mxu0 %v1716
        %1718 = vmatprep.subr.mxu0 0.0
        %v1719 = vand.u32 %v781, 4294901760
        %v1720 = vsub.f32 %v781, %v1719
        %1721 = vmatpush1.msra.mxu0 %v1720
        %1722 = vmatprep.subr.mxu0 0.0
        %v1723 = vand.u32 %v782, 4294901760
        %v1724 = vsub.f32 %v782, %v1723
        %1725 = vmatpush1.msra.mxu0 %v1724
        %1726 = vmatprep.subr.mxu0 0.0
        %v1727 = vand.u32 %v783, 4294901760
        %v1728 = vsub.f32 %v783, %v1727
        %1729 = vmatpush1.msra.mxu0 %v1728
        %1730 = vmatprep.subr.mxu0 0.0
        %v1731 = vand.u32 %v784, 4294901760
        %v1732 = vsub.f32 %v784, %v1731
        %1733 = vmatpush1.msra.mxu0 %v1732
        %1734 = vmatprep.subr.mxu0 0.0
        %v1735 = vand.u32 %v785, 4294901760
        %v1736 = vsub.f32 %v785, %v1735
        %1737 = vmatpush1.msra.mxu0 %v1736
        %1738 = vmatprep.subr.mxu0 0.0
        %1739 = vmatpush1.msra.mxu0 0.0
        %1740 = vmatprep.subr.mxu0 0.0
        %1741 = vmatpush1.msra.mxu0 0.0
        %1742 = vmatprep.subr.mxu0 0.0
        %1743 = vmatpush1.msra.mxu0 0.0
        %1744 = vmatprep.subr.mxu0 0.0
        %1745 = vmatpush1.msra.mxu0 0.0
        %1746 = vmatprep.subr.mxu0 0.0
        %1747 = vmatpush1.msra.mxu0 0.0
        %1748 = vmatprep.subr.mxu0 0.0
        %1749 = vmatpush1.msra.mxu0 0.0
        %1750 = vmatprep.subr.mxu0 0.0
        %1751 = vmatpush1.msra.mxu0 0.0
        %1752 = vmatprep.subr.mxu0 0.0
        %1753 = vmatpush1.msra.mxu0 0.0
        %1754 = vmatprep.subr.mxu0 0.0
        %1755 = vmatpush1.msra.mxu0 0.0
        %1756 = vmatprep.subr.mxu0 0.0
        %1757 = vmatpush1.msra.mxu0 0.0
        %1758 = vmatprep.subr.mxu0 0.0
        %1759 = vmatpush1.msra.mxu0 0.0
        %1760 = vmatprep.subr.mxu0 0.0
        %1761 = vmatpush1.msra.mxu0 0.0
        %1762 = vmatprep.subr.mxu0 0.0
        %1763 = vmatpush1.msra.mxu0 0.0
        %1764 = vmatprep.subr.mxu0 0.0
        %1765 = vmatpush1.msra.mxu0 0.0
        %1766 = vmatprep.subr.mxu0 0.0
        %1767 = vmatpush1.msra.mxu0 0.0
        %1768 = vmatprep.subr.mxu0 0.0
        %1769 = vmatpush1.msra.mxu0 0.0
        %1770 = vmatprep.mubr.f32.mxu0 0.0
        %v1771 = vand.u32 %v352, 4294901760
        %v1772 = vsub.f32 %v352, %v1771
        %1773 = vmatmul.mubr.f32.gmra.mrb[0].mxu0 %v1772
        %v1774 = vpop.f32.mrb[0].mxu0
        %v1775 = vadd.f32 %v1671, %v1774
        %v1776 = vpop.f32.mrb[0].mxu0
        %1777 = vdwg.mxu0
        %1778 = vmatprep.subr.mxu0 0.0
        %v1779 = vand.u32 %v770, 4294901760
        %1780 = vmatpush1.msra.mxu0 %v1779
        %1781 = vmatprep.subr.mxu0 0.0
        %v1782 = vand.u32 %v771, 4294901760
        %1783 = vmatpush1.msra.mxu0 %v1782
        %1784 = vmatprep.subr.mxu0 0.0
        %v1785 = vand.u32 %v772, 4294901760
        %1786 = vmatpush1.msra.mxu0 %v1785
        %1787 = vmatprep.subr.mxu0 0.0
        %v1788 = vand.u32 %v773, 4294901760
        %1789 = vmatpush1.msra.mxu0 %v1788
        %1790 = vmatprep.subr.mxu0 0.0
        %v1791 = vand.u32 %v774, 4294901760
        %1792 = vmatpush1.msra.mxu0 %v1791
        %1793 = vmatprep.subr.mxu0 0.0
        %v1794 = vand.u32 %v775, 4294901760
        %1795 = vmatpush1.msra.mxu0 %v1794
        %1796 = vmatprep.subr.mxu0 0.0
        %v1797 = vand.u32 %v776, 4294901760
        %1798 = vmatpush1.msra.mxu0 %v1797
        %1799 = vmatprep.subr.mxu0 0.0
        %v1800 = vand.u32 %v777, 4294901760
        %1801 = vmatpush1.msra.mxu0 %v1800
        %1802 = vmatprep.subr.mxu0 0.0
        %v1803 = vand.u32 %v778, 4294901760
        %1804 = vmatpush1.msra.mxu0 %v1803
        %1805 = vmatprep.subr.mxu0 0.0
        %v1806 = vand.u32 %v779, 4294901760
        %1807 = vmatpush1.msra.mxu0 %v1806
        %1808 = vmatprep.subr.mxu0 0.0
        %v1809 = vand.u32 %v780, 4294901760
        %1810 = vmatpush1.msra.mxu0 %v1809
        %1811 = vmatprep.subr.mxu0 0.0
        %v1812 = vand.u32 %v781, 4294901760
        %1813 = vmatpush1.msra.mxu0 %v1812
        %1814 = vmatprep.subr.mxu0 0.0
        %v1815 = vand.u32 %v782, 4294901760
        %1816 = vmatpush1.msra.mxu0 %v1815
        %1817 = vmatprep.subr.mxu0 0.0
        %v1818 = vand.u32 %v783, 4294901760
        %1819 = vmatpush1.msra.mxu0 %v1818
        %1820 = vmatprep.subr.mxu0 0.0
        %v1821 = vand.u32 %v784, 4294901760
        %1822 = vmatpush1.msra.mxu0 %v1821
        %1823 = vmatprep.subr.mxu0 0.0
        %v1824 = vand.u32 %v785, 4294901760
        %1825 = vmatpush1.msra.mxu0 %v1824
        %1826 = vmatprep.subr.mxu0 0.0
        %1827 = vmatpush1.msra.mxu0 0.0
        %1828 = vmatprep.subr.mxu0 0.0
        %1829 = vmatpush1.msra.mxu0 0.0
        %1830 = vmatprep.subr.mxu0 0.0
        %1831 = vmatpush1.msra.mxu0 0.0
        %1832 = vmatprep.subr.mxu0 0.0
        %1833 = vmatpush1.msra.mxu0 0.0
        %1834 = vmatprep.subr.mxu0 0.0
        %1835 = vmatpush1.msra.mxu0 0.0
        %1836 = vmatprep.subr.mxu0 0.0
        %1837 = vmatpush1.msra.mxu0 0.0
        %1838 = vmatprep.subr.mxu0 0.0
        %1839 = vmatpush1.msra.mxu0 0.0
        %1840 = vmatprep.subr.mxu0 0.0
        %1841 = vmatpush1.msra.mxu0 0.0
        %1842 = vmatprep.subr.mxu0 0.0
        %1843 = vmatpush1.msra.mxu0 0.0
        %1844 = vmatprep.subr.mxu0 0.0
        %1845 = vmatpush1.msra.mxu0 0.0
        %1846 = vmatprep.subr.mxu0 0.0
        %1847 = vmatpush1.msra.mxu0 0.0
        %1848 = vmatprep.subr.mxu0 0.0
        %1849 = vmatpush1.msra.mxu0 0.0
        %1850 = vmatprep.subr.mxu0 0.0
        %1851 = vmatpush1.msra.mxu0 0.0
        %1852 = vmatprep.subr.mxu0 0.0
        %1853 = vmatpush1.msra.mxu0 0.0
        %1854 = vmatprep.subr.mxu0 0.0
        %1855 = vmatpush1.msra.mxu0 0.0
        %1856 = vmatprep.subr.mxu0 0.0
        %1857 = vmatpush1.msra.mxu0 0.0
        %1858 = vmatprep.mubr.f32.mxu0 0.0
        %v1859 = vand.u32 %v352, 4294901760
        %v1860 = vsub.f32 %v352, %v1859
        %v1861 = vand.u32 %v1860, 4294901760
        %1862 = vmatmul.mubr.f32.gmra.mrb[0].mxu0 %v1861
        %v1863 = vpop.f32.mrb[0].mxu0
        %v1864 = vadd.f32 %v1775, %v1863
        %v1865 = vpop.f32.mrb[0].mxu0
        %1866 = vdwg.mxu0
        %1867 = vmatprep.subr.mxu0 0.0
        %v1868 = vand.u32 %v770, 4294901760
        %v1869 = vsub.f32 %v770, %v1868
        %v1870 = vand.u32 %v1869, 4294901760
        %1871 = vmatpush1.msra.mxu0 %v1870
        %1872 = vmatprep.subr.mxu0 0.0
        %v1873 = vand.u32 %v771, 4294901760
        %v1874 = vsub.f32 %v771, %v1873
        %v1875 = vand.u32 %v1874, 4294901760
        %1876 = vmatpush1.msra.mxu0 %v1875
        %1877 = vmatprep.subr.mxu0 0.0
        %v1878 = vand.u32 %v772, 4294901760
        %v1879 = vsub.f32 %v772, %v1878
        %v1880 = vand.u32 %v1879, 4294901760
        %1881 = vmatpush1.msra.mxu0 %v1880
        %1882 = vmatprep.subr.mxu0 0.0
        %v1883 = vand.u32 %v773, 4294901760
        %v1884 = vsub.f32 %v773, %v1883
        %v1885 = vand.u32 %v1884, 4294901760
        %1886 = vmatpush1.msra.mxu0 %v1885
        %1887 = vmatprep.subr.mxu0 0.0
        %v1888 = vand.u32 %v774, 4294901760
        %v1889 = vsub.f32 %v774, %v1888
        %v1890 = vand.u32 %v1889, 4294901760
        %1891 = vmatpush1.msra.mxu0 %v1890
        %1892 = vmatprep.subr.mxu0 0.0
        %v1893 = vand.u32 %v775, 4294901760
        %v1894 = vsub.f32 %v775, %v1893
        %v1895 = vand.u32 %v1894, 4294901760
        %1896 = vmatpush1.msra.mxu0 %v1895
        %1897 = vmatprep.subr.mxu0 0.0
        %v1898 = vand.u32 %v776, 4294901760
        %v1899 = vsub.f32 %v776, %v1898
        %v1900 = vand.u32 %v1899, 4294901760
        %1901 = vmatpush1.msra.mxu0 %v1900
        %1902 = vmatprep.subr.mxu0 0.0
        %v1903 = vand.u32 %v777, 4294901760
        %v1904 = vsub.f32 %v777, %v1903
        %v1905 = vand.u32 %v1904, 4294901760
        %1906 = vmatpush1.msra.mxu0 %v1905
        %1907 = vmatprep.subr.mxu0 0.0
        %v1908 = vand.u32 %v778, 4294901760
        %v1909 = vsub.f32 %v778, %v1908
        %v1910 = vand.u32 %v1909, 4294901760
        %1911 = vmatpush1.msra.mxu0 %v1910
        %1912 = vmatprep.subr.mxu0 0.0
        %v1913 = vand.u32 %v779, 4294901760
        %v1914 = vsub.f32 %v779, %v1913
        %v1915 = vand.u32 %v1914, 4294901760
        %1916 = vmatpush1.msra.mxu0 %v1915
        %1917 = vmatprep.subr.mxu0 0.0
        %v1918 = vand.u32 %v780, 4294901760
        %v1919 = vsub.f32 %v780, %v1918
        %v1920 = vand.u32 %v1919, 4294901760
        %1921 = vmatpush1.msra.mxu0 %v1920
        %1922 = vmatprep.subr.mxu0 0.0
        %v1923 = vand.u32 %v781, 4294901760
        %v1924 = vsub.f32 %v781, %v1923
        %v1925 = vand.u32 %v1924, 4294901760
        %1926 = vmatpush1.msra.mxu0 %v1925
        %1927 = vmatprep.subr.mxu0 0.0
        %v1928 = vand.u32 %v782, 4294901760
        %v1929 = vsub.f32 %v782, %v1928
        %v1930 = vand.u32 %v1929, 4294901760
        %1931 = vmatpush1.msra.mxu0 %v1930
        %1932 = vmatprep.subr.mxu0 0.0
        %v1933 = vand.u32 %v783, 4294901760
        %v1934 = vsub.f32 %v783, %v1933
        %v1935 = vand.u32 %v1934, 4294901760
        %1936 = vmatpush1.msra.mxu0 %v1935
        %1937 = vmatprep.subr.mxu0 0.0
        %v1938 = vand.u32 %v784, 4294901760
        %v1939 = vsub.f32 %v784, %v1938
        %v1940 = vand.u32 %v1939, 4294901760
        %1941 = vmatpush1.msra.mxu0 %v1940
        %1942 = vmatprep.subr.mxu0 0.0
        %v1943 = vand.u32 %v785, 4294901760
        %v1944 = vsub.f32 %v785, %v1943
        %v1945 = vand.u32 %v1944, 4294901760
        %1946 = vmatpush1.msra.mxu0 %v1945
        %1947 = vmatprep.subr.mxu0 0.0
        %1948 = vmatpush1.msra.mxu0 0.0
        %1949 = vmatprep.subr.mxu0 0.0
        %1950 = vmatpush1.msra.mxu0 0.0
        %1951 = vmatprep.subr.mxu0 0.0
        %1952 = vmatpush1.msra.mxu0 0.0
        %1953 = vmatprep.subr.mxu0 0.0
        %1954 = vmatpush1.msra.mxu0 0.0
        %1955 = vmatprep.subr.mxu0 0.0
        %1956 = vmatpush1.msra.mxu0 0.0
        %1957 = vmatprep.subr.mxu0 0.0
        %1958 = vmatpush1.msra.mxu0 0.0
        %1959 = vmatprep.subr.mxu0 0.0
        %1960 = vmatpush1.msra.mxu0 0.0
        %1961 = vmatprep.subr.mxu0 0.0
        %1962 = vmatpush1.msra.mxu0 0.0
        %1963 = vmatprep.subr.mxu0 0.0
        %1964 = vmatpush1.msra.mxu0 0.0
        %1965 = vmatprep.subr.mxu0 0.0
        %1966 = vmatpush1.msra.mxu0 0.0
        %1967 = vmatprep.subr.mxu0 0.0
        %1968 = vmatpush1.msra.mxu0 0.0
        %1969 = vmatprep.subr.mxu0 0.0
        %1970 = vmatpush1.msra.mxu0 0.0
        %1971 = vmatprep.subr.mxu0 0.0
        %1972 = vmatpush1.msra.mxu0 0.0
        %1973 = vmatprep.subr.mxu0 0.0
        %1974 = vmatpush1.msra.mxu0 0.0
        %1975 = vmatprep.subr.mxu0 0.0
        %1976 = vmatpush1.msra.mxu0 0.0
        %1977 = vmatprep.subr.mxu0 0.0
        %1978 = vmatpush1.msra.mxu0 0.0
        %1979 = vmatprep.mubr.f32.mxu0 0.0
        %v1980 = vand.u32 %v352, 4294901760
        %1981 = vmatmul.mubr.f32.gmra.mrb[0].mxu0 %v1980
        %v1982 = vpop.f32.mrb[0].mxu0
        %v1983 = vadd.f32 %v1864, %v1982
        %v1984 = vpop.f32.mrb[0].mxu0
        %1985 = vdwg.mxu0
        %1986 = vmatprep.subr.mxu0 0.0
        %v1987 = vand.u32 %v770, 4294901760
        %1988 = vmatpush1.msra.mxu0 %v1987
        %1989 = vmatprep.subr.mxu0 0.0
        %v1990 = vand.u32 %v771, 4294901760
        %1991 = vmatpush1.msra.mxu0 %v1990
        %1992 = vmatprep.subr.mxu0 0.0
        %v1993 = vand.u32 %v772, 4294901760
        %1994 = vmatpush1.msra.mxu0 %v1993
        %1995 = vmatprep.subr.mxu0 0.0
        %v1996 = vand.u32 %v773, 4294901760
        %1997 = vmatpush1.msra.mxu0 %v1996
        %1998 = vmatprep.subr.mxu0 0.0
        %v1999 = vand.u32 %v774, 4294901760
        %2000 = vmatpush1.msra.mxu0 %v1999
        %2001 = vmatprep.subr.mxu0 0.0
        %v2002 = vand.u32 %v775, 4294901760
        %2003 = vmatpush1.msra.mxu0 %v2002
        %2004 = vmatprep.subr.mxu0 0.0
        %v2005 = vand.u32 %v776, 4294901760
        %2006 = vmatpush1.msra.mxu0 %v2005
        %2007 = vmatprep.subr.mxu0 0.0
        %v2008 = vand.u32 %v777, 4294901760
        %2009 = vmatpush1.msra.mxu0 %v2008
        %2010 = vmatprep.subr.mxu0 0.0
        %v2011 = vand.u32 %v778, 4294901760
        %2012 = vmatpush1.msra.mxu0 %v2011
        %2013 = vmatprep.subr.mxu0 0.0
        %v2014 = vand.u32 %v779, 4294901760
        %2015 = vmatpush1.msra.mxu0 %v2014
        %2016 = vmatprep.subr.mxu0 0.0
        %v2017 = vand.u32 %v780, 4294901760
        %2018 = vmatpush1.msra.mxu0 %v2017
        %2019 = vmatprep.subr.mxu0 0.0
        %v2020 = vand.u32 %v781, 4294901760
        %2021 = vmatpush1.msra.mxu0 %v2020
        %2022 = vmatprep.subr.mxu0 0.0
        %v2023 = vand.u32 %v782, 4294901760
        %2024 = vmatpush1.msra.mxu0 %v2023
        %2025 = vmatprep.subr.mxu0 0.0
        %v2026 = vand.u32 %v783, 4294901760
        %2027 = vmatpush1.msra.mxu0 %v2026
        %2028 = vmatprep.subr.mxu0 0.0
        %v2029 = vand.u32 %v784, 4294901760
        %2030 = vmatpush1.msra.mxu0 %v2029
        %2031 = vmatprep.subr.mxu0 0.0
        %v2032 = vand.u32 %v785, 4294901760
        %2033 = vmatpush1.msra.mxu0 %v2032
        %2034 = vmatprep.subr.mxu0 0.0
        %2035 = vmatpush1.msra.mxu0 0.0
        %2036 = vmatprep.subr.mxu0 0.0
        %2037 = vmatpush1.msra.mxu0 0.0
        %2038 = vmatprep.subr.mxu0 0.0
        %2039 = vmatpush1.msra.mxu0 0.0
        %2040 = vmatprep.subr.mxu0 0.0
        %2041 = vmatpush1.msra.mxu0 0.0
        %2042 = vmatprep.subr.mxu0 0.0
        %2043 = vmatpush1.msra.mxu0 0.0
        %2044 = vmatprep.subr.mxu0 0.0
        %2045 = vmatpush1.msra.mxu0 0.0
        %2046 = vmatprep.subr.mxu0 0.0
        %2047 = vmatpush1.msra.mxu0 0.0
        %2048 = vmatprep.subr.mxu0 0.0
        %2049 = vmatpush1.msra.mxu0 0.0
        %2050 = vmatprep.subr.mxu0 0.0
        %2051 = vmatpush1.msra.mxu0 0.0
        %2052 = vmatprep.subr.mxu0 0.0
        %2053 = vmatpush1.msra.mxu0 0.0
        %2054 = vmatprep.subr.mxu0 0.0
        %2055 = vmatpush1.msra.mxu0 0.0
        %2056 = vmatprep.subr.mxu0 0.0
        %2057 = vmatpush1.msra.mxu0 0.0
        %2058 = vmatprep.subr.mxu0 0.0
        %2059 = vmatpush1.msra.mxu0 0.0
        %2060 = vmatprep.subr.mxu0 0.0
        %2061 = vmatpush1.msra.mxu0 0.0
        %2062 = vmatprep.subr.mxu0 0.0
        %2063 = vmatpush1.msra.mxu0 0.0
        %2064 = vmatprep.subr.mxu0 0.0
        %2065 = vmatpush1.msra.mxu0 0.0
        %2066 = vmatprep.mubr.f32.mxu0 0.0
        %v2067 = vand.u32 %v352, 4294901760
        %2068 = vmatmul.mubr.f32.gmra.mrb[0].mxu0 %v2067
        %v2069 = vpop.f32.mrb[0].mxu0
        %v2070 = vadd.f32 %v1983, %v2069
        %v2071 = vpop.f32.mrb[0].mxu0
        %2072 = vdwg.mxu0
        %v2073 = vadd.f32 %v1431, %v2070
        %2074 = vst.msk [vmem:[#allocation3] sm:$0x1] %vm1429, %v2073
        %p2075 = scmp.eq.s32.totalorder %s20, 1
        // Predicated region
        $region37: #{tpu_custom_call.1} parent=31 // pred_check
          %p2076 = pneg %p2075
        $region38: #{tpu_custom_call.1} parent=31 // pred_check_branch
          %2078 = sbr.rel (%p2076) target = $region40
        $region39: #{tpu_custom_call.1} parent=31 // pred_region
          %v2079 = vld [vmem:[#allocation2] sm:$0x1]
          %v2080 = vsel %vm1429, %v2079, 0.0
          %2081 = vadd.xlane.f32.xlu0 %v2080
          %v2082 = vpop.xlane.xlu0 %2081
          %v2083 = vrot.slane %v2082, 4
          %v2084 = vadd.f32 %v2082, %v2083
          %v2085 = vrot.slane %v2084, 2
          %v2086 = vadd.f32 %v2084, %v2085
          %v2087 = vrot.slane %v2086, 1
          %v2088 = vadd.f32 %v2086, %v2087
          %s2089 = vtos %v2088
          %v2090 = vld [vmem:[#allocation3] sm:$0x1]
          %v2091 = vsel %vm1429, %v2090, 0.0
          %2092 = vadd.xlane.f32.xlu0 %v2091
          %v2093 = vpop.xlane.xlu0 %2092
          %v2094 = vrot.slane %v2093, 4
          %v2095 = vadd.f32 %v2093, %v2094
          %v2096 = vrot.slane %v2095, 2
          %v2097 = vadd.f32 %v2095, %v2096
          %v2098 = vrot.slane %v2097, 1
          %v2099 = vadd.f32 %v2097, %v2098
          %s2100 = vtos %v2099
          %vm2101 = vcmp.eq.s32.totalorder %v348, 0
          %vm2102 = vcmp.eq.s32.totalorder %v348, 1
          %v2103 = vstv %s2100
          %v2104 = vsel %vm2102, %v2103, 0.0
          %v2105 = vstv %s2089
          %v2106 = vsel %vm2101, %v2105, %v2104
          %2107 = vst [vmem:[#allocation4] sm:$0xff] %v2106
        $region40: #{tpu_custom_call.1} parent=31 // pred_fallthru
          _
        // Predicated region
        $region41: #{tpu_custom_call.1} parent=31 // pred_check
          %p2108 = pneg %p135
        $region42: #{tpu_custom_call.1} parent=31 // pred_check_branch
          %2110 = sbr.rel (%p2108) target = $region44
        $region43: #{tpu_custom_call.1} parent=31 // pred_region
          %s2112 = ssub.s32 128, 128
          %2113 = vsyncadd [#allocation5], %s2112
          %s2114 = smul.addr %s19, 128
          %s2115 = scalar_lea.hbm %s3, %s2114
          %s2117 = sshll.u32 [#allocation4], 4
          %s2118 = int_to_ptr.vmem [resolvable:$true] %s2117
          %2120 = dma.vmem_to_hbm [thread:$0]  %s2118, 128, %s2115, [#allocation5]
        $region44: #{tpu_custom_call.1} parent=31 // pred_fallthru
          _
        // Predicated region
        $region45: #{tpu_custom_call.1} parent=31 // pred_check
          %p2121 = pneg %p135
        $region46: #{tpu_custom_call.1} parent=31 // pred_check_branch
          %2123 = sbr.rel (%p2121) target = $region48
        $region47: #{tpu_custom_call.1} parent=31 // pred_region
          %2124 = dma.done [#allocation5], 128
        $region48: #{tpu_custom_call.1} parent=31 // pred_fallthru
          _
      $region32: #{tpu_custom_call.1} parent=5 // pred_fallthru
        _
      %p2125 = scmp.le.s32.totalorder 2, %s10
      // Predicated region
      $region49: #{tpu_custom_call.1} parent=5 // pred_check
        %p2126 = pneg %p2125
      $region50: #{tpu_custom_call.1} parent=5 // pred_check_branch
        %2128 = sbr.rel (%p2126) target = $region52
      $region51: #{tpu_custom_call.1} parent=5 // pred_region
        %s2129 = ssub.s32 %s10, 2
      $region52: #{tpu_custom_call.1} parent=5 // pred_fallthru
        _
    $region6: #{tpu_custom_call.1} parent=1 // loop_footer
      %s14 = sadd.s32 1, %s10
    $region7: #{tpu_custom_call.1} parent=1 // loop_footer_branch
      %9 = sbr.rel target = $region3
    $region8: #{tpu_custom_call.1} parent=1 // loop_exit
      _
    %2130 = vsyncpa [#allocation5], 1
    %s2131 = scalar_lea.sflag [#allocation5], 1
    %2132 = vsyncpa %s2131, 1

</llo_original>
